<compile_context>
chip_gen: v5e
topology: v5e:2x2
jax: 0.10.0
libtpu: 0.0.40
codegen_flags: <defaults>
</compile_context>

<pallas_src>
import jax
import jax.numpy as jnp
from jax.experimental import pallas as pl
from jax.experimental.pallas import tpu as pltpu


def gcn_attention_kernel(
    x_ref, h0_ref,
    a1blk_ref, w1_ref, b1_ref,
    a2blk_ref, w2_ref, b2_ref,
    wq_ref, bq_ref, wk_ref, bk_ref, wm_ref, bm_ref, v_ref,
    out_ref,
):
    f32 = jnp.float32
    B, N, D = x_ref.shape                                # static at trace time

    x3 = x_ref[...].astype(f32)                          # (B, N, D)
    x = x3.reshape(B * N, D)                             # free: last (lane) dim unchanged
    h0 = h0_ref[...].astype(f32).reshape(B * N, D)

    # ---- GC_Block: both graph convs batched over B via the block-diagonal adjacency ----
    xin = x + h0
    y = jnp.dot(a1blk_ref[...], xin, preferred_element_type=f32)                 # (B*N, D)
    y = jnp.tanh(jnp.dot(y, w1_ref[...], preferred_element_type=f32) + b1_ref[...])
    y = jnp.dot(a2blk_ref[...], y, preferred_element_type=f32)
    y = jnp.tanh(jnp.dot(y, w2_ref[...], preferred_element_type=f32) + b2_ref[...])
    y = y + x                                                                     # GC_Block residual

    # ---- q/k/m projections: three (D,D) matmuls, outputs lane-0 aligned (no XLU realignment) ----
    q = (jnp.dot(y, wq_ref[...], preferred_element_type=f32) + bq_ref[...]).reshape(B, N, D)
    k = (jnp.dot(y, wk_ref[...], preferred_element_type=f32) + bk_ref[...]).reshape(B, N, D)
    m = (jnp.dot(y, wm_ref[...], preferred_element_type=f32) + bm_ref[...]).reshape(B, N, D)

    v = v_ref[...].reshape(1, 1, 1, D)                                            # (1,1,1,D)

    # ---- additive attention, batched over B (no Python loop) ----
    t = jnp.tanh(q[:, :, None, :] + k[:, None, :, :])                             # (B, N, N, D)
    s = jnp.sum(t * v, axis=-1)                                                    # (B, N, N) scores

    s_max = jnp.max(s, axis=-1, keepdims=True)
    e = jnp.exp(s - s_max)
    # NOTE: approx reciprocal (EUP, ~2^-12 rel err) — use an exact divide if downstream code
    # requires exactly-normalized attention weights.
    alpha = e * pl.reciprocal(jnp.sum(e, axis=-1, keepdims=True), approx=True)

    att = jnp.einsum('bij,bjd->bid', alpha, m,
                     preferred_element_type=f32)                                  # (B, N, D)

    # ---- module residual, single coalesced full-slab store ----
    out_ref[...] = (att + x3).astype(out_ref.dtype)


def prepare_params(params, batch):
    """One-time derivation of kernel operands (hoisted OUT of the per-forward hot path).

    Folds the per-batch graph conv (A @ X_b) into one block-diagonal matmul over the whole
    (B*N, D) slab: kron(I_B, A) @ concat_b(X_b).  Scaling guard: once B*N > 128 (one MXU tile),
    the zero blocks stop being free — switch back to a per-batch conv with a grid over B.
    """
    a1, w1, b1, a2, w2, b2, wq, bq, wk, bk, wm, bm, v = params
    eye_b = jnp.eye(batch, dtype=jnp.float32)
    a1blk = jnp.kron(eye_b, a1)                           # (B*N, B*N)
    a2blk = jnp.kron(eye_b, a2)
    return (a1blk, w1, b1, a2blk, w2, b2, wq, bq, wk, bk, wm, bm, v)


def gcn_attention_block(x, h0, prepared):
    """x, h0: (B, N, D) float32.  `prepared` = prepare_params(params, B).  Returns (B, N, D)."""
    B, N, D = x.shape
    vmem = pl.BlockSpec(memory_space=pltpu.MemorySpace.VMEM)
    return pl.pallas_call(
        gcn_attention_kernel,
        out_shape=jax.ShapeDtypeStruct((B, N, D), jnp.float32),
        in_specs=[vmem] * (2 + len(prepared)),
        out_specs=vmem,
        # x is fully read into a value before the single output store -> safe to alias.
        input_output_aliases={0: 0},
    )(x, h0, *prepared)


def reference(x, h0, params):
    """Pure-JAX reference with identical semantics (for a correctness check)."""
    a1, w1, b1, a2, w2, b2, wq, bq, wk, bk, wm, bm, v = params

    def one(xb, hb):
        xin = xb + hb
        y = a1 @ xin @ w1 + b1
        y = jnp.tanh(y)
        y = a2 @ y @ w2 + b2
        y = jnp.tanh(y)
        y = y + xb
        q = y @ wq + bq
        k = y @ wk + bk
        m = y @ wm + bm
        s = jnp.sum(jnp.tanh(q[:, None, :] + k[None, :, :]) * v[None, :, :], axis=-1)
        alpha = jax.nn.softmax(s, axis=-1)
        att = alpha @ m
        return att + xb

    return jax.vmap(one)(x, h0)


def make_params(key, node_n, d_model):
    ks = jax.random.split(key, 13)
    n, d = node_n, d_model
    a1 = jax.random.normal(ks[0], (n, n), jnp.float32) / n
    w1 = jax.random.normal(ks[1], (d, d), jnp.float32) * 0.2
    b1 = jax.random.normal(ks[2], (1, d), jnp.float32) * 0.1
    a2 = jax.random.normal(ks[3], (n, n), jnp.float32) / n
    w2 = jax.random.normal(ks[4], (d, d), jnp.float32) * 0.2
    b2 = jax.random.normal(ks[5], (1, d), jnp.float32) * 0.1
    wq = jax.random.normal(ks[6], (d, d), jnp.float32) * 0.2
    bq = jax.random.normal(ks[7], (1, d), jnp.float32) * 0.1
    wk = jax.random.normal(ks[8], (d, d), jnp.float32) * 0.2
    bk = jax.random.normal(ks[9], (1, d), jnp.float32) * 0.1
    wm = jax.random.normal(ks[10], (d, d), jnp.float32) * 0.2
    bm = jax.random.normal(ks[11], (1, d), jnp.float32) * 0.1
    v = jax.random.normal(ks[12], (1, d), jnp.float32) * 0.2
    return (a1, w1, b1, a2, w2, b2, wq, bq, wk, bk, wm, bm, v)


if __name__ == "__main__":
    # Small shapes: batch=2, node_n=16, d_model=32 (stage / input_n only affect training-time
    # internals of GC_Block and are not needed for the inference forward pass).
    B, NODE_N, D_MODEL = 2, 16, 32

    key = jax.random.PRNGKey(0)
    kx, kh, kp = jax.random.split(key, 3)
    x = jax.random.normal(kx, (B, NODE_N, D_MODEL), jnp.float32)
    h0 = jax.random.normal(kh, (B, NODE_N, D_MODEL), jnp.float32)
    params = make_params(kp, NODE_N, D_MODEL)

    # Reference first (x is donated to the kernel output via input_output_aliases).
    ref = jax.block_until_ready(reference(x, h0, params))

    # One-time param preparation (kron'd adjacencies) — outside the hot path.
    prepared = jax.tree_util.tree_map(jax.block_until_ready, prepare_params(params, B))

    out = gcn_attention_block(x, h0, prepared)
    out = jax.block_until_ready(out)

    assert out.shape == (B, NODE_N, D_MODEL)
    # Tolerance loosened vs. exact-f32 because the softmax denominator uses the EUP approximate
    # reciprocal (pl.reciprocal(approx=True), ~2^-12 relative error).
    assert jnp.allclose(out, ref, atol=3e-3, rtol=3e-3), "Pallas kernel mismatch vs JAX reference"

    print("KERNEL_OK")
</pallas_src>

<mosaic_0001>
module attributes {stable_mosaic.version = 11 : i64} {
  func.func @gcn_attention_kernel(%arg0: memref<2x16x32xf32, #tpu.memory_space<vmem>>, %arg1: memref<2x16x32xf32, #tpu.memory_space<vmem>>, %arg2: memref<32x32xf32, #tpu.memory_space<vmem>>, %arg3: memref<32x32xf32, #tpu.memory_space<vmem>>, %arg4: memref<1x32xf32, #tpu.memory_space<vmem>>, %arg5: memref<32x32xf32, #tpu.memory_space<vmem>>, %arg6: memref<32x32xf32, #tpu.memory_space<vmem>>, %arg7: memref<1x32xf32, #tpu.memory_space<vmem>>, %arg8: memref<32x32xf32, #tpu.memory_space<vmem>>, %arg9: memref<1x32xf32, #tpu.memory_space<vmem>>, %arg10: memref<32x32xf32, #tpu.memory_space<vmem>>, %arg11: memref<1x32xf32, #tpu.memory_space<vmem>>, %arg12: memref<32x32xf32, #tpu.memory_space<vmem>>, %arg13: memref<1x32xf32, #tpu.memory_space<vmem>>, %arg14: memref<1x32xf32, #tpu.memory_space<vmem>>, %arg15: memref<2x16x32xf32, #tpu.memory_space<vmem>>) attributes {dimension_semantics = [], scalar_prefetch = 0 : i64, scratch_operands = 0 : i64, tpu.core_type = #tpu.core_type<tc>} {
    %c0 = arith.constant 0 : index
    %c0_0 = arith.constant 0 : index
    %c0_1 = arith.constant 0 : index
    %0 = vector.load %arg0[%c0, %c0_0, %c0_1] : memref<2x16x32xf32, #tpu.memory_space<vmem>>, vector<2x16x32xf32>
    %1 = vector.shape_cast %0 : vector<2x16x32xf32> to vector<32x32xf32>
    %c0_2 = arith.constant 0 : index
    %c0_3 = arith.constant 0 : index
    %c0_4 = arith.constant 0 : index
    %2 = vector.load %arg1[%c0_2, %c0_3, %c0_4] : memref<2x16x32xf32, #tpu.memory_space<vmem>>, vector<2x16x32xf32>
    %3 = vector.shape_cast %2 : vector<2x16x32xf32> to vector<32x32xf32>
    %4 = arith.addf %1, %3 : vector<32x32xf32>
    %c0_5 = arith.constant 0 : index
    %c0_6 = arith.constant 0 : index
    %5 = vector.load %arg2[%c0_5, %c0_6] : memref<32x32xf32, #tpu.memory_space<vmem>>, vector<32x32xf32>
    %cst = arith.constant dense<0.000000e+00> : vector<32x32xf32>
    %6 = tpu.matmul %5, %4, %cst {dimension_numbers = #tpu.dot_dimension_numbers<[1], [0], [0], [1], [0, 0, 1, 1], [], []>} : vector<32x32xf32>, vector<32x32xf32>, vector<32x32xf32> -> vector<32x32xf32>
    %c0_7 = arith.constant 0 : index
    %c0_8 = arith.constant 0 : index
    %7 = vector.load %arg3[%c0_7, %c0_8] : memref<32x32xf32, #tpu.memory_space<vmem>>, vector<32x32xf32>
    %cst_9 = arith.constant dense<0.000000e+00> : vector<32x32xf32>
    %8 = tpu.matmul %6, %7, %cst_9 {dimension_numbers = #tpu.dot_dimension_numbers<[1], [0], [0], [1], [0, 0, 1, 1], [], []>} : vector<32x32xf32>, vector<32x32xf32>, vector<32x32xf32> -> vector<32x32xf32>
    %c0_10 = arith.constant 0 : index
    %c0_11 = arith.constant 0 : index
    %9 = vector.load %arg4[%c0_10, %c0_11] : memref<1x32xf32, #tpu.memory_space<vmem>>, vector<1x32xf32>
    %10 = vector.broadcast %9 : vector<1x32xf32> to vector<32x32xf32>
    %11 = arith.addf %8, %10 : vector<32x32xf32>
    %12 = math.tanh %11 : vector<32x32xf32>
    %c0_12 = arith.constant 0 : index
    %c0_13 = arith.constant 0 : index
    %13 = vector.load %arg5[%c0_12, %c0_13] : memref<32x32xf32, #tpu.memory_space<vmem>>, vector<32x32xf32>
    %cst_14 = arith.constant dense<0.000000e+00> : vector<32x32xf32>
    %14 = tpu.matmul %13, %12, %cst_14 {dimension_numbers = #tpu.dot_dimension_numbers<[1], [0], [0], [1], [0, 0, 1, 1], [], []>} : vector<32x32xf32>, vector<32x32xf32>, vector<32x32xf32> -> vector<32x32xf32>
    %c0_15 = arith.constant 0 : index
    %c0_16 = arith.constant 0 : index
    %15 = vector.load %arg6[%c0_15, %c0_16] : memref<32x32xf32, #tpu.memory_space<vmem>>, vector<32x32xf32>
    %cst_17 = arith.constant dense<0.000000e+00> : vector<32x32xf32>
    %16 = tpu.matmul %14, %15, %cst_17 {dimension_numbers = #tpu.dot_dimension_numbers<[1], [0], [0], [1], [0, 0, 1, 1], [], []>} : vector<32x32xf32>, vector<32x32xf32>, vector<32x32xf32> -> vector<32x32xf32>
    %c0_18 = arith.constant 0 : index
    %c0_19 = arith.constant 0 : index
    %17 = vector.load %arg7[%c0_18, %c0_19] : memref<1x32xf32, #tpu.memory_space<vmem>>, vector<1x32xf32>
    %18 = vector.broadcast %17 : vector<1x32xf32> to vector<32x32xf32>
    %19 = arith.addf %16, %18 : vector<32x32xf32>
    %20 = math.tanh %19 : vector<32x32xf32>
    %21 = arith.addf %20, %1 : vector<32x32xf32>
    %c0_20 = arith.constant 0 : index
    %c0_21 = arith.constant 0 : index
    %22 = vector.load %arg8[%c0_20, %c0_21] : memref<32x32xf32, #tpu.memory_space<vmem>>, vector<32x32xf32>
    %cst_22 = arith.constant dense<0.000000e+00> : vector<32x32xf32>
    %23 = tpu.matmul %21, %22, %cst_22 {dimension_numbers = #tpu.dot_dimension_numbers<[1], [0], [0], [1], [0, 0, 1, 1], [], []>} : vector<32x32xf32>, vector<32x32xf32>, vector<32x32xf32> -> vector<32x32xf32>
    %c0_23 = arith.constant 0 : index
    %c0_24 = arith.constant 0 : index
    %24 = vector.load %arg9[%c0_23, %c0_24] : memref<1x32xf32, #tpu.memory_space<vmem>>, vector<1x32xf32>
    %25 = vector.broadcast %24 : vector<1x32xf32> to vector<32x32xf32>
    %26 = arith.addf %23, %25 : vector<32x32xf32>
    %27 = vector.shape_cast %26 : vector<32x32xf32> to vector<2x16x32xf32>
    %c0_25 = arith.constant 0 : index
    %c0_26 = arith.constant 0 : index
    %28 = vector.load %arg10[%c0_25, %c0_26] : memref<32x32xf32, #tpu.memory_space<vmem>>, vector<32x32xf32>
    %cst_27 = arith.constant dense<0.000000e+00> : vector<32x32xf32>
    %29 = tpu.matmul %21, %28, %cst_27 {dimension_numbers = #tpu.dot_dimension_numbers<[1], [0], [0], [1], [0, 0, 1, 1], [], []>} : vector<32x32xf32>, vector<32x32xf32>, vector<32x32xf32> -> vector<32x32xf32>
    %c0_28 = arith.constant 0 : index
    %c0_29 = arith.constant 0 : index
    %30 = vector.load %arg11[%c0_28, %c0_29] : memref<1x32xf32, #tpu.memory_space<vmem>>, vector<1x32xf32>
    %31 = vector.broadcast %30 : vector<1x32xf32> to vector<32x32xf32>
    %32 = arith.addf %29, %31 : vector<32x32xf32>
    %33 = vector.shape_cast %32 : vector<32x32xf32> to vector<2x16x32xf32>
    %c0_30 = arith.constant 0 : index
    %c0_31 = arith.constant 0 : index
    %34 = vector.load %arg12[%c0_30, %c0_31] : memref<32x32xf32, #tpu.memory_space<vmem>>, vector<32x32xf32>
    %cst_32 = arith.constant dense<0.000000e+00> : vector<32x32xf32>
    %35 = tpu.matmul %21, %34, %cst_32 {dimension_numbers = #tpu.dot_dimension_numbers<[1], [0], [0], [1], [0, 0, 1, 1], [], []>} : vector<32x32xf32>, vector<32x32xf32>, vector<32x32xf32> -> vector<32x32xf32>
    %c0_33 = arith.constant 0 : index
    %c0_34 = arith.constant 0 : index
    %36 = vector.load %arg13[%c0_33, %c0_34] : memref<1x32xf32, #tpu.memory_space<vmem>>, vector<1x32xf32>
    %37 = vector.broadcast %36 : vector<1x32xf32> to vector<32x32xf32>
    %38 = arith.addf %35, %37 : vector<32x32xf32>
    %39 = vector.shape_cast %38 : vector<32x32xf32> to vector<2x16x32xf32>
    %c0_35 = arith.constant 0 : index
    %c0_36 = arith.constant 0 : index
    %40 = vector.load %arg14[%c0_35, %c0_36] : memref<1x32xf32, #tpu.memory_space<vmem>>, vector<1x32xf32>
    %41 = vector.shape_cast %40 : vector<1x32xf32> to vector<1x1x1x32xf32>
    %42 = vector.shape_cast %27 : vector<2x16x32xf32> to vector<2x16x1x32xf32>
    %43 = vector.shape_cast %33 : vector<2x16x32xf32> to vector<2x1x16x32xf32>
    %44 = vector.broadcast %42 : vector<2x16x1x32xf32> to vector<2x16x16x32xf32>
    %45 = vector.broadcast %43 : vector<2x1x16x32xf32> to vector<2x16x16x32xf32>
    %46 = arith.addf %44, %45 : vector<2x16x16x32xf32>
    %47 = math.tanh %46 : vector<2x16x16x32xf32>
    %48 = vector.broadcast %41 : vector<1x1x1x32xf32> to vector<2x16x16x32xf32>
    %49 = arith.mulf %47, %48 : vector<2x16x16x32xf32>
    %cst_37 = arith.constant dense<0.000000e+00> : vector<2x16x16xf32>
    %50 = vector.multi_reduction <add>, %49, %cst_37 [3] : vector<2x16x16x32xf32> to vector<2x16x16xf32>
    %cst_38 = arith.constant dense<0xFF800000> : vector<2x16xf32>
    %51 = vector.multi_reduction <maximumf>, %50, %cst_38 [2] : vector<2x16x16xf32> to vector<2x16xf32>
    %52 = vector.shape_cast %51 : vector<2x16xf32> to vector<2x16x1xf32>
    %53 = vector.broadcast %52 : vector<2x16x1xf32> to vector<2x16x16xf32>
    %54 = arith.subf %50, %53 : vector<2x16x16xf32>
    %55 = math.exp %54 : vector<2x16x16xf32>
    %cst_39 = arith.constant dense<0.000000e+00> : vector<2x16xf32>
    %56 = vector.multi_reduction <add>, %55, %cst_39 [2] : vector<2x16x16xf32> to vector<2x16xf32>
    %57 = vector.shape_cast %56 : vector<2x16xf32> to vector<2x16x1xf32>
    %58 = tpu.reciprocal %57 {approx = true} : vector<2x16x1xf32> -> vector<2x16x1xf32>
    %59 = vector.broadcast %58 : vector<2x16x1xf32> to vector<2x16x16xf32>
    %60 = arith.mulf %55, %59 : vector<2x16x16xf32>
    "tpu.trace_start"() <{level = 10 : i32, message = "bij,bjd->bid"}> : () -> ()
    %cst_40 = arith.constant dense<0.000000e+00> : vector<2x16x32xf32>
    %61 = tpu.matmul %60, %39, %cst_40 {dimension_numbers = #tpu.dot_dimension_numbers<[2], [1], [1], [2], [0, 0, 0, 1, 1, 2], [0], [0]>} : vector<2x16x16xf32>, vector<2x16x32xf32>, vector<2x16x32xf32> -> vector<2x16x32xf32>
    "tpu.trace_stop"() : () -> ()
    %62 = arith.addf %61, %0 : vector<2x16x32xf32>
    %c0_41 = arith.constant 0 : index
    %c0_42 = arith.constant 0 : index
    %c0_43 = arith.constant 0 : index
    %63 = vector.load %arg15[%c0_41, %c0_42, %c0_43] : memref<2x16x32xf32, #tpu.memory_space<vmem>>, vector<2x16x32xf32>
    tpu.vector_store %arg15[%c0_41, %c0_42, %c0_43], %62 {strides = array<i32>} : memref<2x16x32xf32, #tpu.memory_space<vmem>>, vector<2x16x32xf32>,
    return
  }
}

</mosaic_0001>

<llo_original>
// kernel: tpu_custom_call.1
$region0: #{tpu_custom_call.1}
  #allocation0 [shape = 'u32[]', space=smem, size = 0x4, offset = 0x4, fixed_abs, tag = 'smem constant byte address 0x4 - core index']
  #allocation1 [shape = 'u32[72,128]{1,0:T(1,128)}', space=vmem, size = 0x9000, scoped, tag = 'internal scratch']
  %s0 = inlined_call_operand.hbm [shape: f32[2,16,32], index: 0, kind: input, shape index: {}, may-alias: {0,15}]
  %s1 = inlined_call_operand.vmem [shape: f32[2,16,32], index: 1, kind: input, shape index: {}]
  %s2 = inlined_call_operand.vmem [shape: f32[32,32], index: 2, kind: input, shape index: {}]
  %s3 = inlined_call_operand.hbm [shape: f32[32,32], index: 3, kind: input, shape index: {}]
  %s4 = inlined_call_operand.vmem [shape: f32[1,32], index: 4, kind: input, shape index: {}]
  %s5 = inlined_call_operand.hbm [shape: f32[32,32], index: 5, kind: input, shape index: {}]
  %s6 = inlined_call_operand.hbm [shape: f32[32,32], index: 6, kind: input, shape index: {}]
  %s7 = inlined_call_operand.vmem [shape: f32[1,32], index: 7, kind: input, shape index: {}]
  %s8 = inlined_call_operand.hbm [shape: f32[32,32], index: 8, kind: input, shape index: {}]
  %s9 = inlined_call_operand.vmem [shape: f32[1,32], index: 9, kind: input, shape index: {}]
  %s10 = inlined_call_operand.hbm [shape: f32[32,32], index: 10, kind: input, shape index: {}]
  %s11 = inlined_call_operand.vmem [shape: f32[1,32], index: 11, kind: input, shape index: {}]
  %s12 = inlined_call_operand.hbm [shape: f32[32,32], index: 12, kind: input, shape index: {}]
  %s13 = inlined_call_operand.vmem [shape: f32[1,32], index: 13, kind: input, shape index: {}]
  %s14 = inlined_call_operand.vmem [shape: f32[1,32], index: 14, kind: input, shape index: {}]
  %s15 = inlined_call_operand.hbm [shape: f32[2,16,32], index: 15, kind: output, shape index: {}, may-alias: {0,15}]
  %s16 = sld [smem:[#allocation0]]
  $region98: #{tpu_custom_call.1} parent=0
    _
  %s18 = ssub.s32 1, %s16
  %s19 = scalar_select 0, %s18, %s16
  $region1: #{tpu_custom_call.1} parent=0
    #allocation2 [shape = 'u8[16384]{0}', space=vmem, size = 0x4000, scoped, tag = 'input window, operand 0, single buffered']
    #allocation3 [shape = 's32[1]{0}', space=sflag, size = 0x4, scoped, tag = 'scoped memory for tpu_custom_call.1']
    #allocation4 [shape = 's32[1]{0}', space=sflag, size = 0x4, scoped, tag = 'scoped memory for tpu_custom_call.1']
    #allocation5 [shape = 'u8[16384]{0}', space=vmem, size = 0x4000, scoped, tag = 'input window, operand 3, single buffered']
    #allocation6 [shape = 's32[1]{0}', space=sflag, size = 0x4, scoped, tag = 'scoped memory for tpu_custom_call.1']
    #allocation7 [shape = 'u8[16384]{0}', space=vmem, size = 0x4000, scoped, tag = 'input window, operand 5, single buffered']
    #allocation8 [shape = 'u8[16384]{0}', space=vmem, size = 0x4000, scoped, tag = 'input window, operand 6, single buffered']
    #allocation9 [shape = 's32[1]{0}', space=sflag, size = 0x4, scoped, tag = 'scoped memory for tpu_custom_call.1']
    #allocation10 [shape = 'u8[16384]{0}', space=vmem, size = 0x4000, scoped, tag = 'input window, operand 8, single buffered']
    #allocation11 [shape = 'u8[16384]{0}', space=vmem, size = 0x4000, scoped, tag = 'input window, operand 10, single buffered']
    #allocation12 [shape = 's32[1]{0}', space=sflag, size = 0x4, scoped, tag = 'scoped memory for tpu_custom_call.1']
    #allocation13 [shape = 'u8[16384]{0}', space=vmem, size = 0x4000, scoped, tag = 'input window, operand 12, single buffered']
    #allocation14 [shape = 'u8[16384]{0}', space=vmem, size = 0x4000, scoped, tag = 'output window, operand 0, single buffered']
    %20 = vsyncpa [#allocation3], 0
    %21 = vsyncpa [#allocation6], 0
    %22 = vsyncpa [#allocation9], 0
    %23 = vsyncpa [#allocation12], 0
    %24 = vsyncpa [#allocation4], 0
    // Predicated region
    $region2: #{tpu_custom_call.1} parent=1 // pred_check
      _
    $region3: #{tpu_custom_call.1} parent=1 // pred_check_branch
      %26 = sbr.rel (0) target = $region5
    $region4: #{tpu_custom_call.1} parent=1 // pred_region
      %28 = vsyncadd [#allocation3], 0
      %s29 = sshll.u32 %s0, 4
      %s30 = int_to_ptr.hbm [resolvable:$true] %s29
      %s31 = sshll.u32 [#allocation2], 4
      %s32 = int_to_ptr.vmem [resolvable:$true] %s31
      %37 = dma.hbm_to_vmem [thread:$0]  %s30, 512, %s32, [#allocation3], 128, 128, 8
    $region5: #{tpu_custom_call.1} parent=1 // pred_fallthru
      _
    // Predicated region
    $region6: #{tpu_custom_call.1} parent=1 // pred_check
      _
    $region7: #{tpu_custom_call.1} parent=1 // pred_check_branch
      %39 = sbr.rel (0) target = $region9
    $region8: #{tpu_custom_call.1} parent=1 // pred_region
      _
    $region9: #{tpu_custom_call.1} parent=1 // pred_fallthru
      _
    // Predicated region
    $region10: #{tpu_custom_call.1} parent=1 // pred_check
      _
    $region11: #{tpu_custom_call.1} parent=1 // pred_check_branch
      %41 = sbr.rel (0) target = $region13
    $region12: #{tpu_custom_call.1} parent=1 // pred_region
      _
    $region13: #{tpu_custom_call.1} parent=1 // pred_fallthru
      _
    // Predicated region
    $region14: #{tpu_custom_call.1} parent=1 // pred_check
      _
    $region15: #{tpu_custom_call.1} parent=1 // pred_check_branch
      %43 = sbr.rel (0) target = $region17
    $region16: #{tpu_custom_call.1} parent=1 // pred_region
      %45 = vsyncadd [#allocation6], 0
      %s46 = sshll.u32 %s3, 4
      %s47 = int_to_ptr.hbm [resolvable:$true] %s46
      %s48 = sshll.u32 [#allocation5], 4
      %s49 = int_to_ptr.vmem [resolvable:$true] %s48
      %54 = dma.hbm_to_vmem [thread:$0]  %s47, 512, %s49, [#allocation6], 128, 128, 8
    $region17: #{tpu_custom_call.1} parent=1 // pred_fallthru
      _
    // Predicated region
    $region18: #{tpu_custom_call.1} parent=1 // pred_check
      _
    $region19: #{tpu_custom_call.1} parent=1 // pred_check_branch
      %56 = sbr.rel (0) target = $region21
    $region20: #{tpu_custom_call.1} parent=1 // pred_region
      _
    $region21: #{tpu_custom_call.1} parent=1 // pred_fallthru
      _
    // Predicated region
    $region22: #{tpu_custom_call.1} parent=1 // pred_check
      _
    $region23: #{tpu_custom_call.1} parent=1 // pred_check_branch
      %58 = sbr.rel (0) target = $region25
    $region24: #{tpu_custom_call.1} parent=1 // pred_region
      %60 = vsyncadd [#allocation6], 0
      %s61 = sshll.u32 %s5, 4
      %s62 = int_to_ptr.hbm [resolvable:$true] %s61
      %s63 = sshll.u32 [#allocation7], 4
      %s64 = int_to_ptr.vmem [resolvable:$true] %s63
      %69 = dma.hbm_to_vmem [thread:$0]  %s62, 512, %s64, [#allocation6], 128, 128, 8
    $region25: #{tpu_custom_call.1} parent=1 // pred_fallthru
      _
    // Predicated region
    $region26: #{tpu_custom_call.1} parent=1 // pred_check
      _
    $region27: #{tpu_custom_call.1} parent=1 // pred_check_branch
      %71 = sbr.rel (0) target = $region29
    $region28: #{tpu_custom_call.1} parent=1 // pred_region
      %73 = vsyncadd [#allocation9], 0
      %s74 = sshll.u32 %s6, 4
      %s75 = int_to_ptr.hbm [resolvable:$true] %s74
      %s76 = sshll.u32 [#allocation8], 4
      %s77 = int_to_ptr.vmem [resolvable:$true] %s76
      %82 = dma.hbm_to_vmem [thread:$0]  %s75, 512, %s77, [#allocation9], 128, 128, 8
    $region29: #{tpu_custom_call.1} parent=1 // pred_fallthru
      _
    // Predicated region
    $region30: #{tpu_custom_call.1} parent=1 // pred_check
      _
    $region31: #{tpu_custom_call.1} parent=1 // pred_check_branch
      %84 = sbr.rel (0) target = $region33
    $region32: #{tpu_custom_call.1} parent=1 // pred_region
      _
    $region33: #{tpu_custom_call.1} parent=1 // pred_fallthru
      _
    // Predicated region
    $region34: #{tpu_custom_call.1} parent=1 // pred_check
      _
    $region35: #{tpu_custom_call.1} parent=1 // pred_check_branch
      %86 = sbr.rel (0) target = $region37
    $region36: #{tpu_custom_call.1} parent=1 // pred_region
      %88 = vsyncadd [#allocation9], 0
      %s89 = sshll.u32 %s8, 4
      %s90 = int_to_ptr.hbm [resolvable:$true] %s89
      %s91 = sshll.u32 [#allocation10], 4
      %s92 = int_to_ptr.vmem [resolvable:$true] %s91
      %97 = dma.hbm_to_vmem [thread:$0]  %s90, 512, %s92, [#allocation9], 128, 128, 8
    $region37: #{tpu_custom_call.1} parent=1 // pred_fallthru
      _
    // Predicated region
    $region38: #{tpu_custom_call.1} parent=1 // pred_check
      _
    $region39: #{tpu_custom_call.1} parent=1 // pred_check_branch
      %99 = sbr.rel (0) target = $region41
    $region40: #{tpu_custom_call.1} parent=1 // pred_region
      _
    $region41: #{tpu_custom_call.1} parent=1 // pred_fallthru
      _
    // Predicated region
    $region42: #{tpu_custom_call.1} parent=1 // pred_check
      _
    $region43: #{tpu_custom_call.1} parent=1 // pred_check_branch
      %101 = sbr.rel (0) target = $region45
    $region44: #{tpu_custom_call.1} parent=1 // pred_region
      %103 = vsyncadd [#allocation12], 0
      %s104 = sshll.u32 %s10, 4
      %s105 = int_to_ptr.hbm [resolvable:$true] %s104
      %s106 = sshll.u32 [#allocation11], 4
      %s107 = int_to_ptr.vmem [resolvable:$true] %s106
      %112 = dma.hbm_to_vmem [thread:$0]  %s105, 512, %s107, [#allocation12], 128, 128, 8
    $region45: #{tpu_custom_call.1} parent=1 // pred_fallthru
      _
    // Predicated region
    $region46: #{tpu_custom_call.1} parent=1 // pred_check
      _
    $region47: #{tpu_custom_call.1} parent=1 // pred_check_branch
      %114 = sbr.rel (0) target = $region49
    $region48: #{tpu_custom_call.1} parent=1 // pred_region
      _
    $region49: #{tpu_custom_call.1} parent=1 // pred_fallthru
      _
    // Predicated region
    $region50: #{tpu_custom_call.1} parent=1 // pred_check
      _
    $region51: #{tpu_custom_call.1} parent=1 // pred_check_branch
      %116 = sbr.rel (0) target = $region53
    $region52: #{tpu_custom_call.1} parent=1 // pred_region
      %118 = vsyncadd [#allocation12], 0
      %s119 = sshll.u32 %s12, 4
      %s120 = int_to_ptr.hbm [resolvable:$true] %s119
      %s121 = sshll.u32 [#allocation13], 4
      %s122 = int_to_ptr.vmem [resolvable:$true] %s121
      %127 = dma.hbm_to_vmem [thread:$0]  %s120, 512, %s122, [#allocation12], 128, 128, 8
    $region53: #{tpu_custom_call.1} parent=1 // pred_fallthru
      _
    // Predicated region
    $region54: #{tpu_custom_call.1} parent=1 // pred_check
      _
    $region55: #{tpu_custom_call.1} parent=1 // pred_check_branch
      %129 = sbr.rel (0) target = $region57
    $region56: #{tpu_custom_call.1} parent=1 // pred_region
      _
    $region57: #{tpu_custom_call.1} parent=1 // pred_fallthru
      _
    // Predicated region
    $region58: #{tpu_custom_call.1} parent=1 // pred_check
      _
    $region59: #{tpu_custom_call.1} parent=1 // pred_check_branch
      %131 = sbr.rel (0) target = $region61
    $region60: #{tpu_custom_call.1} parent=1 // pred_region
      _
    $region61: #{tpu_custom_call.1} parent=1 // pred_fallthru
      _
    // Predicated region
    $region62: #{tpu_custom_call.1} parent=1 // pred_check
      _
    $region63: #{tpu_custom_call.1} parent=1 // pred_check_branch
      %133 = sbr.rel (0) target = $region65
    $region64: #{tpu_custom_call.1} parent=1 // pred_region
      %135 = dma.done [#allocation3], 512
    $region65: #{tpu_custom_call.1} parent=1 // pred_fallthru
      _
    // Predicated region
    $region66: #{tpu_custom_call.1} parent=1 // pred_check
      _
    $region67: #{tpu_custom_call.1} parent=1 // pred_check_branch
      %137 = sbr.rel (0) target = $region69
    $region68: #{tpu_custom_call.1} parent=1 // pred_region
      %139 = dma.done [#allocation6], 512
    $region69: #{tpu_custom_call.1} parent=1 // pred_fallthru
      _
    // Predicated region
    $region70: #{tpu_custom_call.1} parent=1 // pred_check
      _
    $region71: #{tpu_custom_call.1} parent=1 // pred_check_branch
      %141 = sbr.rel (0) target = $region73
    $region72: #{tpu_custom_call.1} parent=1 // pred_region
      %143 = dma.done [#allocation6], 512
    $region73: #{tpu_custom_call.1} parent=1 // pred_fallthru
      _
    // Predicated region
    $region74: #{tpu_custom_call.1} parent=1 // pred_check
      _
    $region75: #{tpu_custom_call.1} parent=1 // pred_check_branch
      %145 = sbr.rel (0) target = $region77
    $region76: #{tpu_custom_call.1} parent=1 // pred_region
      %147 = dma.done [#allocation9], 512
    $region77: #{tpu_custom_call.1} parent=1 // pred_fallthru
      _
    // Predicated region
    $region78: #{tpu_custom_call.1} parent=1 // pred_check
      _
    $region79: #{tpu_custom_call.1} parent=1 // pred_check_branch
      %149 = sbr.rel (0) target = $region81
    $region80: #{tpu_custom_call.1} parent=1 // pred_region
      %151 = dma.done [#allocation9], 512
    $region81: #{tpu_custom_call.1} parent=1 // pred_fallthru
      _
    // Predicated region
    $region82: #{tpu_custom_call.1} parent=1 // pred_check
      _
    $region83: #{tpu_custom_call.1} parent=1 // pred_check_branch
      %153 = sbr.rel (0) target = $region85
    $region84: #{tpu_custom_call.1} parent=1 // pred_region
      %155 = dma.done [#allocation12], 512
    $region85: #{tpu_custom_call.1} parent=1 // pred_fallthru
      _
    // Predicated region
    $region86: #{tpu_custom_call.1} parent=1 // pred_check
      _
    $region87: #{tpu_custom_call.1} parent=1 // pred_check_branch
      %157 = sbr.rel (0) target = $region89
    $region88: #{tpu_custom_call.1} parent=1 // pred_region
      %159 = dma.done [#allocation12], 512
    $region89: #{tpu_custom_call.1} parent=1 // pred_fallthru
      _
    %v160 = vld [vmem:[#allocation2] sm:$0xff]
    %v161 = vld [vmem:[#allocation2 + $0x8] sm:$0xff]
    %v162 = vld [vmem:[#allocation2 + $0x10] sm:$0xff]
    %v163 = vld [vmem:[#allocation2 + $0x18] sm:$0xff]
    %v164 = vld [vmem:[%s1] sm:$0xff]
    %v165 = vld [vmem:[%s1 + $0x8] sm:$0xff]
    %v166 = vld [vmem:[%s1 + $0x10] sm:$0xff]
    %v167 = vld [vmem:[%s1 + $0x18] sm:$0xff]
    %v168 = vadd.f32 %v160, %v164
    %v169 = vadd.f32 %v161, %v165
    %v170 = vadd.f32 %v162, %v166
    %v171 = vadd.f32 %v163, %v167
    %v172 = vld [vmem:[%s2] sm:$0xff]
    %v173 = vld [vmem:[%s2 + $0x8] sm:$0xff]
    %v174 = vld [vmem:[%s2 + $0x10] sm:$0xff]
    %v175 = vld [vmem:[%s2 + $0x18] sm:$0xff]
    %vm176 = vcmask 261120
    %v178 = vsel %vm176, %v172, 0
    %v181 = vsel %vm176, %v173, 0
    %v184 = vsel %vm176, %v174, 0
    %v187 = vsel %vm176, %v175, 0
    %189 = vmatpush.msra.mxu0 0.0
    %190 = vmatpush.msra.mxu0 0.0
    %191 = vmatpush.msra.mxu0 0.0
    %192 = vmatpush.msra.mxu0 0.0
    %193 = vmatpush.msra.mxu0 0.0
    %194 = vmatpush.msra.mxu0 0.0
    %195 = vmatpush.msra.mxu0 0.0
    %196 = vmatpush.msra.mxu0 0.0
    %197 = vmatpush.msra.mxu0 0.0
    %198 = vmatpush.msra.mxu0 0.0
    %199 = vmatpush.msra.mxu0 0.0
    %200 = vmatpush.msra.mxu0 0.0
    %201 = vmatpush.msra.mxu0 %v171
    %202 = vmatpush.msra.mxu0 %v170
    %203 = vmatpush.msra.mxu0 %v169
    %204 = vmatpush.msra.mxu0 %v168
    %205 = vmatmul.f32.gmra.mxu0 %v178
    %v206 = vpop.f32.mrf.mxu0
    %v207 = vadd.f32 0.0, %v206
    %208 = vmatmul.f32.gmra.mxu0 %v181
    %v209 = vpop.f32.mrf.mxu0
    %v210 = vadd.f32 0.0, %v209
    %211 = vmatmul.f32.gmra.mxu0 %v184
    %v212 = vpop.f32.mrf.mxu0
    %v213 = vadd.f32 0.0, %v212
    %214 = vmatmul.f32.gmra.mxu0 %v187
    %v215 = vpop.f32.mrf.mxu0
    %v216 = vadd.f32 0.0, %v215
    %217 = vdwg.mxu0
    %v218 = vld [vmem:[#allocation5] sm:$0xff]
    %v219 = vld [vmem:[#allocation5 + $0x8] sm:$0xff]
    %v220 = vld [vmem:[#allocation5 + $0x10] sm:$0xff]
    %v221 = vld [vmem:[#allocation5 + $0x18] sm:$0xff]
    %v222 = vld [vmem:[%s4] sm:$0x1]
    %v224 = vperm.slane %v222, 0
    %v227 = vsel %vm176, %v207, 0
    %v230 = vsel %vm176, %v210, 0
    %v233 = vsel %vm176, %v213, 0
    %v236 = vsel %vm176, %v216, 0
    %238 = vmatpush.msra.mxu0 0.0
    %239 = vmatpush.msra.mxu0 0.0
    %240 = vmatpush.msra.mxu0 0.0
    %241 = vmatpush.msra.mxu0 0.0
    %242 = vmatpush.msra.mxu0 0.0
    %243 = vmatpush.msra.mxu0 0.0
    %244 = vmatpush.msra.mxu0 0.0
    %245 = vmatpush.msra.mxu0 0.0
    %246 = vmatpush.msra.mxu0 0.0
    %247 = vmatpush.msra.mxu0 0.0
    %248 = vmatpush.msra.mxu0 0.0
    %249 = vmatpush.msra.mxu0 0.0
    %250 = vmatpush.msra.mxu0 %v221
    %251 = vmatpush.msra.mxu0 %v220
    %252 = vmatpush.msra.mxu0 %v219
    %253 = vmatpush.msra.mxu0 %v218
    %254 = vmatmul.f32.gmra.mxu0 %v227
    %v255 = vpop.f32.mrf.mxu0
    %v256 = vadd.f32 %v224, %v255
    %257 = vmatmul.f32.gmra.mxu0 %v230
    %v258 = vpop.f32.mrf.mxu0
    %v259 = vadd.f32 %v224, %v258
    %260 = vmatmul.f32.gmra.mxu0 %v233
    %v261 = vpop.f32.mrf.mxu0
    %v262 = vadd.f32 %v224, %v261
    %263 = vmatmul.f32.gmra.mxu0 %v236
    %v264 = vpop.f32.mrf.mxu0
    %v265 = vadd.f32 %v224, %v264
    %266 = vdwg.mxu0
    %v267 = vtanh.pop %v256
    %v268 = vtanh.pop %v259
    %v269 = vtanh.pop %v262
    %v270 = vtanh.pop %v265
    %v271 = vld [vmem:[#allocation7] sm:$0xff]
    %v272 = vld [vmem:[#allocation7 + $0x8] sm:$0xff]
    %v273 = vld [vmem:[#allocation7 + $0x10] sm:$0xff]
    %v274 = vld [vmem:[#allocation7 + $0x18] sm:$0xff]
    %v276 = vsel %vm176, %v271, 0
    %v279 = vsel %vm176, %v272, 0
    %v282 = vsel %vm176, %v273, 0
    %v285 = vsel %vm176, %v274, 0
    %287 = vmatpush.msra.mxu0 0.0
    %288 = vmatpush.msra.mxu0 0.0
    %289 = vmatpush.msra.mxu0 0.0
    %290 = vmatpush.msra.mxu0 0.0
    %291 = vmatpush.msra.mxu0 0.0
    %292 = vmatpush.msra.mxu0 0.0
    %293 = vmatpush.msra.mxu0 0.0
    %294 = vmatpush.msra.mxu0 0.0
    %295 = vmatpush.msra.mxu0 0.0
    %296 = vmatpush.msra.mxu0 0.0
    %297 = vmatpush.msra.mxu0 0.0
    %298 = vmatpush.msra.mxu0 0.0
    %299 = vmatpush.msra.mxu0 %v270
    %300 = vmatpush.msra.mxu0 %v269
    %301 = vmatpush.msra.mxu0 %v268
    %302 = vmatpush.msra.mxu0 %v267
    %303 = vmatmul.f32.gmra.mxu0 %v276
    %v304 = vpop.f32.mrf.mxu0
    %v305 = vadd.f32 0.0, %v304
    %306 = vmatmul.f32.gmra.mxu0 %v279
    %v307 = vpop.f32.mrf.mxu0
    %v308 = vadd.f32 0.0, %v307
    %309 = vmatmul.f32.gmra.mxu0 %v282
    %v310 = vpop.f32.mrf.mxu0
    %v311 = vadd.f32 0.0, %v310
    %312 = vmatmul.f32.gmra.mxu0 %v285
    %v313 = vpop.f32.mrf.mxu0
    %v314 = vadd.f32 0.0, %v313
    %315 = vdwg.mxu0
    %v316 = vld [vmem:[#allocation8] sm:$0xff]
    %v317 = vld [vmem:[#allocation8 + $0x8] sm:$0xff]
    %v318 = vld [vmem:[#allocation8 + $0x10] sm:$0xff]
    %v319 = vld [vmem:[#allocation8 + $0x18] sm:$0xff]
    %v320 = vld [vmem:[%s7] sm:$0x1]
    %v322 = vperm.slane %v320, 0
    %v325 = vsel %vm176, %v305, 0
    %v328 = vsel %vm176, %v308, 0
    %v331 = vsel %vm176, %v311, 0
    %v334 = vsel %vm176, %v314, 0
    %336 = vmatpush.msra.mxu0 0.0
    %337 = vmatpush.msra.mxu0 0.0
    %338 = vmatpush.msra.mxu0 0.0
    %339 = vmatpush.msra.mxu0 0.0
    %340 = vmatpush.msra.mxu0 0.0
    %341 = vmatpush.msra.mxu0 0.0
    %342 = vmatpush.msra.mxu0 0.0
    %343 = vmatpush.msra.mxu0 0.0
    %344 = vmatpush.msra.mxu0 0.0
    %345 = vmatpush.msra.mxu0 0.0
    %346 = vmatpush.msra.mxu0 0.0
    %347 = vmatpush.msra.mxu0 0.0
    %348 = vmatpush.msra.mxu0 %v319
    %349 = vmatpush.msra.mxu0 %v318
    %350 = vmatpush.msra.mxu0 %v317
    %351 = vmatpush.msra.mxu0 %v316
    %352 = vmatmul.f32.gmra.mxu0 %v325
    %v353 = vpop.f32.mrf.mxu0
    %v354 = vadd.f32 %v322, %v353
    %355 = vmatmul.f32.gmra.mxu0 %v328
    %v356 = vpop.f32.mrf.mxu0
    %v357 = vadd.f32 %v322, %v356
    %358 = vmatmul.f32.gmra.mxu0 %v331
    %v359 = vpop.f32.mrf.mxu0
    %v360 = vadd.f32 %v322, %v359
    %361 = vmatmul.f32.gmra.mxu0 %v334
    %v362 = vpop.f32.mrf.mxu0
    %v363 = vadd.f32 %v322, %v362
    %364 = vdwg.mxu0
    %v365 = vtanh.pop %v354
    %v366 = vtanh.pop %v357
    %v367 = vtanh.pop %v360
    %v368 = vtanh.pop %v363
    %v369 = vadd.f32 %v365, %v160
    %v370 = vadd.f32 %v366, %v161
    %v371 = vadd.f32 %v367, %v162
    %v372 = vadd.f32 %v368, %v163
    %v373 = vld [vmem:[#allocation10] sm:$0xff]
    %v374 = vld [vmem:[#allocation10 + $0x8] sm:$0xff]
    %v375 = vld [vmem:[#allocation10 + $0x10] sm:$0xff]
    %v376 = vld [vmem:[#allocation10 + $0x18] sm:$0xff]
    %v377 = vld [vmem:[%s9] sm:$0x1]
    %v379 = vperm.slane %v377, 0
    %v382 = vsel %vm176, %v369, 0
    %v385 = vsel %vm176, %v370, 0
    %v388 = vsel %vm176, %v371, 0
    %v391 = vsel %vm176, %v372, 0
    %393 = vmatpush.msra.mxu0 0.0
    %394 = vmatpush.msra.mxu0 0.0
    %395 = vmatpush.msra.mxu0 0.0
    %396 = vmatpush.msra.mxu0 0.0
    %397 = vmatpush.msra.mxu0 0.0
    %398 = vmatpush.msra.mxu0 0.0
    %399 = vmatpush.msra.mxu0 0.0
    %400 = vmatpush.msra.mxu0 0.0
    %401 = vmatpush.msra.mxu0 0.0
    %402 = vmatpush.msra.mxu0 0.0
    %403 = vmatpush.msra.mxu0 0.0
    %404 = vmatpush.msra.mxu0 0.0
    %405 = vmatpush.msra.mxu0 %v376
    %406 = vmatpush.msra.mxu0 %v375
    %407 = vmatpush.msra.mxu0 %v374
    %408 = vmatpush.msra.mxu0 %v373
    %409 = vmatmul.f32.gmra.mxu0 %v382
    %v410 = vpop.f32.mrf.mxu0
    %v411 = vadd.f32 %v379, %v410
    %412 = vmatmul.f32.gmra.mxu0 %v385
    %v413 = vpop.f32.mrf.mxu0
    %v414 = vadd.f32 %v379, %v413
    %415 = vmatmul.f32.gmra.mxu0 %v388
    %v416 = vpop.f32.mrf.mxu0
    %v417 = vadd.f32 %v379, %v416
    %418 = vmatmul.f32.gmra.mxu0 %v391
    %v419 = vpop.f32.mrf.mxu0
    %v420 = vadd.f32 %v379, %v419
    %421 = vdwg.mxu0
    %v422 = vld [vmem:[#allocation11] sm:$0xff]
    %v423 = vld [vmem:[#allocation11 + $0x8] sm:$0xff]
    %v424 = vld [vmem:[#allocation11 + $0x10] sm:$0xff]
    %v425 = vld [vmem:[#allocation11 + $0x18] sm:$0xff]
    %v426 = vld [vmem:[%s11] sm:$0x1]
    %v428 = vperm.slane %v426, 0
    %430 = vmatpush.msra.mxu0 0.0
    %431 = vmatpush.msra.mxu0 0.0
    %432 = vmatpush.msra.mxu0 0.0
    %433 = vmatpush.msra.mxu0 0.0
    %434 = vmatpush.msra.mxu0 0.0
    %435 = vmatpush.msra.mxu0 0.0
    %436 = vmatpush.msra.mxu0 0.0
    %437 = vmatpush.msra.mxu0 0.0
    %438 = vmatpush.msra.mxu0 0.0
    %439 = vmatpush.msra.mxu0 0.0
    %440 = vmatpush.msra.mxu0 0.0
    %441 = vmatpush.msra.mxu0 0.0
    %442 = vmatpush.msra.mxu0 %v425
    %443 = vmatpush.msra.mxu0 %v424
    %444 = vmatpush.msra.mxu0 %v423
    %445 = vmatpush.msra.mxu0 %v422
    %446 = vmatmul.f32.gmra.mxu0 %v382
    %v447 = vpop.f32.mrf.mxu0
    %v448 = vadd.f32 %v428, %v447
    %449 = vmatmul.f32.gmra.mxu0 %v385
    %v450 = vpop.f32.mrf.mxu0
    %v451 = vadd.f32 %v428, %v450
    %452 = vmatmul.f32.gmra.mxu0 %v388
    %v453 = vpop.f32.mrf.mxu0
    %v454 = vadd.f32 %v428, %v453
    %455 = vmatmul.f32.gmra.mxu0 %v391
    %v456 = vpop.f32.mrf.mxu0
    %v457 = vadd.f32 %v428, %v456
    %458 = vdwg.mxu0
    %v459 = vld [vmem:[#allocation13] sm:$0xff]
    %v460 = vld [vmem:[#allocation13 + $0x8] sm:$0xff]
    %v461 = vld [vmem:[#allocation13 + $0x10] sm:$0xff]
    %v462 = vld [vmem:[#allocation13 + $0x18] sm:$0xff]
    %v463 = vld [vmem:[%s13] sm:$0x1]
    %v465 = vperm.slane %v463, 0
    %467 = vmatpush.msra.mxu0 0.0
    %468 = vmatpush.msra.mxu0 0.0
    %469 = vmatpush.msra.mxu0 0.0
    %470 = vmatpush.msra.mxu0 0.0
    %471 = vmatpush.msra.mxu0 0.0
    %472 = vmatpush.msra.mxu0 0.0
    %473 = vmatpush.msra.mxu0 0.0
    %474 = vmatpush.msra.mxu0 0.0
    %475 = vmatpush.msra.mxu0 0.0
    %476 = vmatpush.msra.mxu0 0.0
    %477 = vmatpush.msra.mxu0 0.0
    %478 = vmatpush.msra.mxu0 0.0
    %479 = vmatpush.msra.mxu0 %v462
    %480 = vmatpush.msra.mxu0 %v461
    %481 = vmatpush.msra.mxu0 %v460
    %482 = vmatpush.msra.mxu0 %v459
    %483 = vmatmul.f32.gmra.mxu0 %v382
    %v484 = vpop.f32.mrf.mxu0
    %v485 = vadd.f32 %v465, %v484
    %486 = vmatmul.f32.gmra.mxu0 %v385
    %v487 = vpop.f32.mrf.mxu0
    %v488 = vadd.f32 %v465, %v487
    %489 = vmatmul.f32.gmra.mxu0 %v388
    %v490 = vpop.f32.mrf.mxu0
    %v491 = vadd.f32 %v465, %v490
    %492 = vmatmul.f32.gmra.mxu0 %v391
    %v493 = vpop.f32.mrf.mxu0
    %v494 = vadd.f32 %v465, %v493
    %495 = vdwg.mxu0
    %v496 = vld [vmem:[%s14] sm:$0x1]
    %v501 = vrot.slane %v411, 1
    %v502 = vrot.slane %v411, 2
    %v503 = vrot.slane %v411, 3
    %v504 = vrot.slane %v411, 4
    %v505 = vrot.slane %v411, 5
    %v506 = vrot.slane %v411, 6
    %v507 = vrot.slane %v411, 7
    %v508 = vrot.slane %v414, 1
    %v509 = vrot.slane %v414, 2
    %v510 = vrot.slane %v414, 3
    %v511 = vrot.slane %v414, 4
    %v512 = vrot.slane %v414, 5
    %v513 = vrot.slane %v414, 6
    %v514 = vrot.slane %v414, 7
    %v515 = vrot.slane %v417, 1
    %v516 = vrot.slane %v417, 2
    %v517 = vrot.slane %v417, 3
    %v518 = vrot.slane %v417, 4
    %v519 = vrot.slane %v417, 5
    %v520 = vrot.slane %v417, 6
    %v521 = vrot.slane %v417, 7
    %v522 = vrot.slane %v420, 1
    %v523 = vrot.slane %v420, 2
    %v524 = vrot.slane %v420, 3
    %v525 = vrot.slane %v420, 4
    %v526 = vrot.slane %v420, 5
    %v527 = vrot.slane %v420, 6
    %v528 = vrot.slane %v420, 7
    %v529 = vperm.slane %v411, 0
    %v530 = vperm.slane %v501, 0
    %v531 = vperm.slane %v502, 0
    %v532 = vperm.slane %v503, 0
    %v533 = vperm.slane %v504, 0
    %v534 = vperm.slane %v505, 0
    %v535 = vperm.slane %v506, 0
    %v536 = vperm.slane %v507, 0
    %v537 = vperm.slane %v414, 0
    %v538 = vperm.slane %v508, 0
    %v539 = vperm.slane %v509, 0
    %v540 = vperm.slane %v510, 0
    %v541 = vperm.slane %v511, 0
    %v542 = vperm.slane %v512, 0
    %v543 = vperm.slane %v513, 0
    %v544 = vperm.slane %v514, 0
    %v545 = vperm.slane %v417, 0
    %v546 = vperm.slane %v515, 0
    %v547 = vperm.slane %v516, 0
    %v548 = vperm.slane %v517, 0
    %v549 = vperm.slane %v518, 0
    %v550 = vperm.slane %v519, 0
    %v551 = vperm.slane %v520, 0
    %v552 = vperm.slane %v521, 0
    %v553 = vperm.slane %v420, 0
    %v554 = vperm.slane %v522, 0
    %v555 = vperm.slane %v523, 0
    %v556 = vperm.slane %v524, 0
    %v557 = vperm.slane %v525, 0
    %v558 = vperm.slane %v526, 0
    %v559 = vperm.slane %v527, 0
    %v560 = vperm.slane %v528, 0
    %v593 = vadd.f32 %v529, %v448
    %v594 = vadd.f32 %v529, %v451
    %v595 = vadd.f32 %v530, %v448
    %v596 = vadd.f32 %v530, %v451
    %v597 = vadd.f32 %v531, %v448
    %v598 = vadd.f32 %v531, %v451
    %v599 = vadd.f32 %v532, %v448
    %v600 = vadd.f32 %v532, %v451
    %v601 = vadd.f32 %v533, %v448
    %v602 = vadd.f32 %v533, %v451
    %v603 = vadd.f32 %v534, %v448
    %v604 = vadd.f32 %v534, %v451
    %v605 = vadd.f32 %v535, %v448
    %v606 = vadd.f32 %v535, %v451
    %v607 = vadd.f32 %v536, %v448
    %v608 = vadd.f32 %v536, %v451
    %v609 = vadd.f32 %v537, %v448
    %v610 = vadd.f32 %v537, %v451
    %v611 = vadd.f32 %v538, %v448
    %v612 = vadd.f32 %v538, %v451
    %v613 = vadd.f32 %v539, %v448
    %v614 = vadd.f32 %v539, %v451
    %v615 = vadd.f32 %v540, %v448
    %v616 = vadd.f32 %v540, %v451
    %v617 = vadd.f32 %v541, %v448
    %v618 = vadd.f32 %v541, %v451
    %v619 = vadd.f32 %v542, %v448
    %v620 = vadd.f32 %v542, %v451
    %v621 = vadd.f32 %v543, %v448
    %v622 = vadd.f32 %v543, %v451
    %v623 = vadd.f32 %v544, %v448
    %v624 = vadd.f32 %v544, %v451
    %v625 = vadd.f32 %v545, %v454
    %v626 = vadd.f32 %v545, %v457
    %v627 = vadd.f32 %v546, %v454
    %v628 = vadd.f32 %v546, %v457
    %v629 = vadd.f32 %v547, %v454
    %v630 = vadd.f32 %v547, %v457
    %v631 = vadd.f32 %v548, %v454
    %v632 = vadd.f32 %v548, %v457
    %v633 = vadd.f32 %v549, %v454
    %v634 = vadd.f32 %v549, %v457
    %v635 = vadd.f32 %v550, %v454
    %v636 = vadd.f32 %v550, %v457
    %v637 = vadd.f32 %v551, %v454
    %v638 = vadd.f32 %v551, %v457
    %v639 = vadd.f32 %v552, %v454
    %v640 = vadd.f32 %v552, %v457
    %v641 = vadd.f32 %v553, %v454
    %v642 = vadd.f32 %v553, %v457
    %v643 = vadd.f32 %v554, %v454
    %v644 = vadd.f32 %v554, %v457
    %v645 = vadd.f32 %v555, %v454
    %v646 = vadd.f32 %v555, %v457
    %v647 = vadd.f32 %v556, %v454
    %v648 = vadd.f32 %v556, %v457
    %v649 = vadd.f32 %v557, %v454
    %v650 = vadd.f32 %v557, %v457
    %v651 = vadd.f32 %v558, %v454
    %v652 = vadd.f32 %v558, %v457
    %v653 = vadd.f32 %v559, %v454
    %v654 = vadd.f32 %v559, %v457
    %v655 = vadd.f32 %v560, %v454
    %v656 = vadd.f32 %v560, %v457
    %v657 = vtanh.pop %v593
    %v658 = vtanh.pop %v594
    %v659 = vtanh.pop %v595
    %v660 = vtanh.pop %v596
    %v661 = vtanh.pop %v597
    %v662 = vtanh.pop %v598
    %v663 = vtanh.pop %v599
    %v664 = vtanh.pop %v600
    %v665 = vtanh.pop %v601
    %v666 = vtanh.pop %v602
    %v667 = vtanh.pop %v603
    %v668 = vtanh.pop %v604
    %v669 = vtanh.pop %v605
    %v670 = vtanh.pop %v606
    %v671 = vtanh.pop %v607
    %v672 = vtanh.pop %v608
    %v673 = vtanh.pop %v609
    %v674 = vtanh.pop %v610
    %v675 = vtanh.pop %v611
    %v676 = vtanh.pop %v612
    %v677 = vtanh.pop %v613
    %v678 = vtanh.pop %v614
    %v679 = vtanh.pop %v615
    %v680 = vtanh.pop %v616
    %v681 = vtanh.pop %v617
    %v682 = vtanh.pop %v618
    %v683 = vtanh.pop %v619
    %v684 = vtanh.pop %v620
    %v685 = vtanh.pop %v621
    %v686 = vtanh.pop %v622
    %v687 = vtanh.pop %v623
    %v688 = vtanh.pop %v624
    %v689 = vtanh.pop %v625
    %v690 = vtanh.pop %v626
    %v691 = vtanh.pop %v627
    %v692 = vtanh.pop %v628
    %v693 = vtanh.pop %v629
    %v694 = vtanh.pop %v630
    %v695 = vtanh.pop %v631
    %v696 = vtanh.pop %v632
    %v697 = vtanh.pop %v633
    %v698 = vtanh.pop %v634
    %v699 = vtanh.pop %v635
    %v700 = vtanh.pop %v636
    %v701 = vtanh.pop %v637
    %v702 = vtanh.pop %v638
    %v703 = vtanh.pop %v639
    %v704 = vtanh.pop %v640
    %v705 = vtanh.pop %v641
    %v706 = vtanh.pop %v642
    %v707 = vtanh.pop %v643
    %v708 = vtanh.pop %v644
    %v709 = vtanh.pop %v645
    %v710 = vtanh.pop %v646
    %v711 = vtanh.pop %v647
    %v712 = vtanh.pop %v648
    %v713 = vtanh.pop %v649
    %v714 = vtanh.pop %v650
    %v715 = vtanh.pop %v651
    %v716 = vtanh.pop %v652
    %v717 = vtanh.pop %v653
    %v718 = vtanh.pop %v654
    %v719 = vtanh.pop %v655
    %v720 = vtanh.pop %v656
    %v722 = vperm.slane %v496, 0
    %v724 = vmul.f32 %v657, %v722
    %v725 = vmul.f32 %v658, %v722
    %v726 = vmul.f32 %v659, %v722
    %v727 = vmul.f32 %v660, %v722
    %v728 = vmul.f32 %v661, %v722
    %v729 = vmul.f32 %v662, %v722
    %v730 = vmul.f32 %v663, %v722
    %v731 = vmul.f32 %v664, %v722
    %v732 = vmul.f32 %v665, %v722
    %v733 = vmul.f32 %v666, %v722
    %v734 = vmul.f32 %v667, %v722
    %v735 = vmul.f32 %v668, %v722
    %v736 = vmul.f32 %v669, %v722
    %v737 = vmul.f32 %v670, %v722
    %v738 = vmul.f32 %v671, %v722
    %v739 = vmul.f32 %v672, %v722
    %v740 = vmul.f32 %v673, %v722
    %v741 = vmul.f32 %v674, %v722
    %v742 = vmul.f32 %v675, %v722
    %v743 = vmul.f32 %v676, %v722
    %v744 = vmul.f32 %v677, %v722
    %v745 = vmul.f32 %v678, %v722
    %v746 = vmul.f32 %v679, %v722
    %v747 = vmul.f32 %v680, %v722
    %v748 = vmul.f32 %v681, %v722
    %v749 = vmul.f32 %v682, %v722
    %v750 = vmul.f32 %v683, %v722
    %v751 = vmul.f32 %v684, %v722
    %v752 = vmul.f32 %v685, %v722
    %v753 = vmul.f32 %v686, %v722
    %v754 = vmul.f32 %v687, %v722
    %v755 = vmul.f32 %v688, %v722
    %v756 = vmul.f32 %v689, %v722
    %v757 = vmul.f32 %v690, %v722
    %v758 = vmul.f32 %v691, %v722
    %v759 = vmul.f32 %v692, %v722
    %v760 = vmul.f32 %v693, %v722
    %v761 = vmul.f32 %v694, %v722
    %v762 = vmul.f32 %v695, %v722
    %v763 = vmul.f32 %v696, %v722
    %v764 = vmul.f32 %v697, %v722
    %v765 = vmul.f32 %v698, %v722
    %v766 = vmul.f32 %v699, %v722
    %v767 = vmul.f32 %v700, %v722
    %v768 = vmul.f32 %v701, %v722
    %v769 = vmul.f32 %v702, %v722
    %v770 = vmul.f32 %v703, %v722
    %v771 = vmul.f32 %v704, %v722
    %v772 = vmul.f32 %v705, %v722
    %v773 = vmul.f32 %v706, %v722
    %v774 = vmul.f32 %v707, %v722
    %v775 = vmul.f32 %v708, %v722
    %v776 = vmul.f32 %v709, %v722
    %v777 = vmul.f32 %v710, %v722
    %v778 = vmul.f32 %v711, %v722
    %v779 = vmul.f32 %v712, %v722
    %v780 = vmul.f32 %v713, %v722
    %v781 = vmul.f32 %v714, %v722
    %v782 = vmul.f32 %v715, %v722
    %v783 = vmul.f32 %v716, %v722
    %v784 = vmul.f32 %v717, %v722
    %v785 = vmul.f32 %v718, %v722
    %v786 = vmul.f32 %v719, %v722
    %v787 = vmul.f32 %v720, %v722
    %v788 = vsel %vm176, %v724, 0.0
    %789 = vadd.xlane.f32.xlu0 %v788
    %v790 = vpop.xlane.xlu0 %789
    %v791 = vsel %vm176, %v725, 0.0
    %792 = vadd.xlane.f32.xlu0 %v791
    %v793 = vpop.xlane.xlu0 %792
    %v794 = vsel %vm176, %v726, 0.0
    %795 = vadd.xlane.f32.xlu0 %v794
    %v796 = vpop.xlane.xlu0 %795
    %v797 = vsel %vm176, %v727, 0.0
    %798 = vadd.xlane.f32.xlu0 %v797
    %v799 = vpop.xlane.xlu0 %798
    %v800 = vsel %vm176, %v728, 0.0
    %801 = vadd.xlane.f32.xlu0 %v800
    %v802 = vpop.xlane.xlu0 %801
    %v803 = vsel %vm176, %v729, 0.0
    %804 = vadd.xlane.f32.xlu0 %v803
    %v805 = vpop.xlane.xlu0 %804
    %v806 = vsel %vm176, %v730, 0.0
    %807 = vadd.xlane.f32.xlu0 %v806
    %v808 = vpop.xlane.xlu0 %807
    %v809 = vsel %vm176, %v731, 0.0
    %810 = vadd.xlane.f32.xlu0 %v809
    %v811 = vpop.xlane.xlu0 %810
    %v812 = vsel %vm176, %v732, 0.0
    %813 = vadd.xlane.f32.xlu0 %v812
    %v814 = vpop.xlane.xlu0 %813
    %v815 = vsel %vm176, %v733, 0.0
    %816 = vadd.xlane.f32.xlu0 %v815
    %v817 = vpop.xlane.xlu0 %816
    %v818 = vsel %vm176, %v734, 0.0
    %819 = vadd.xlane.f32.xlu0 %v818
    %v820 = vpop.xlane.xlu0 %819
    %v821 = vsel %vm176, %v735, 0.0
    %822 = vadd.xlane.f32.xlu0 %v821
    %v823 = vpop.xlane.xlu0 %822
    %v824 = vsel %vm176, %v736, 0.0
    %825 = vadd.xlane.f32.xlu0 %v824
    %v826 = vpop.xlane.xlu0 %825
    %v827 = vsel %vm176, %v737, 0.0
    %828 = vadd.xlane.f32.xlu0 %v827
    %v829 = vpop.xlane.xlu0 %828
    %v830 = vsel %vm176, %v738, 0.0
    %831 = vadd.xlane.f32.xlu0 %v830
    %v832 = vpop.xlane.xlu0 %831
    %v833 = vsel %vm176, %v739, 0.0
    %834 = vadd.xlane.f32.xlu0 %v833
    %v835 = vpop.xlane.xlu0 %834
    %v836 = vsel %vm176, %v740, 0.0
    %837 = vadd.xlane.f32.xlu0 %v836
    %v838 = vpop.xlane.xlu0 %837
    %v839 = vsel %vm176, %v741, 0.0
    %840 = vadd.xlane.f32.xlu0 %v839
    %v841 = vpop.xlane.xlu0 %840
    %v842 = vsel %vm176, %v742, 0.0
    %843 = vadd.xlane.f32.xlu0 %v842
    %v844 = vpop.xlane.xlu0 %843
    %v845 = vsel %vm176, %v743, 0.0
    %846 = vadd.xlane.f32.xlu0 %v845
    %v847 = vpop.xlane.xlu0 %846
    %v848 = vsel %vm176, %v744, 0.0
    %849 = vadd.xlane.f32.xlu0 %v848
    %v850 = vpop.xlane.xlu0 %849
    %v851 = vsel %vm176, %v745, 0.0
    %852 = vadd.xlane.f32.xlu0 %v851
    %v853 = vpop.xlane.xlu0 %852
    %v854 = vsel %vm176, %v746, 0.0
    %855 = vadd.xlane.f32.xlu0 %v854
    %v856 = vpop.xlane.xlu0 %855
    %v857 = vsel %vm176, %v747, 0.0
    %858 = vadd.xlane.f32.xlu0 %v857
    %v859 = vpop.xlane.xlu0 %858
    %v860 = vsel %vm176, %v748, 0.0
    %861 = vadd.xlane.f32.xlu0 %v860
    %v862 = vpop.xlane.xlu0 %861
    %v863 = vsel %vm176, %v749, 0.0
    %864 = vadd.xlane.f32.xlu0 %v863
    %v865 = vpop.xlane.xlu0 %864
    %v866 = vsel %vm176, %v750, 0.0
    %867 = vadd.xlane.f32.xlu0 %v866
    %v868 = vpop.xlane.xlu0 %867
    %v869 = vsel %vm176, %v751, 0.0
    %870 = vadd.xlane.f32.xlu0 %v869
    %v871 = vpop.xlane.xlu0 %870
    %v872 = vsel %vm176, %v752, 0.0
    %873 = vadd.xlane.f32.xlu0 %v872
    %v874 = vpop.xlane.xlu0 %873
    %v875 = vsel %vm176, %v753, 0.0
    %876 = vadd.xlane.f32.xlu0 %v875
    %v877 = vpop.xlane.xlu0 %876
    %v878 = vsel %vm176, %v754, 0.0
    %879 = vadd.xlane.f32.xlu0 %v878
    %v880 = vpop.xlane.xlu0 %879
    %v881 = vsel %vm176, %v755, 0.0
    %882 = vadd.xlane.f32.xlu0 %v881
    %v883 = vpop.xlane.xlu0 %882
    %v884 = vsel %vm176, %v756, 0.0
    %885 = vadd.xlane.f32.xlu0 %v884
    %v886 = vpop.xlane.xlu0 %885
    %v887 = vsel %vm176, %v757, 0.0
    %888 = vadd.xlane.f32.xlu0 %v887
    %v889 = vpop.xlane.xlu0 %888
    %v890 = vsel %vm176, %v758, 0.0
    %891 = vadd.xlane.f32.xlu0 %v890
    %v892 = vpop.xlane.xlu0 %891
    %v893 = vsel %vm176, %v759, 0.0
    %894 = vadd.xlane.f32.xlu0 %v893
    %v895 = vpop.xlane.xlu0 %894
    %v896 = vsel %vm176, %v760, 0.0
    %897 = vadd.xlane.f32.xlu0 %v896
    %v898 = vpop.xlane.xlu0 %897
    %v899 = vsel %vm176, %v761, 0.0
    %900 = vadd.xlane.f32.xlu0 %v899
    %v901 = vpop.xlane.xlu0 %900
    %v902 = vsel %vm176, %v762, 0.0
    %903 = vadd.xlane.f32.xlu0 %v902
    %v904 = vpop.xlane.xlu0 %903
    %v905 = vsel %vm176, %v763, 0.0
    %906 = vadd.xlane.f32.xlu0 %v905
    %v907 = vpop.xlane.xlu0 %906
    %v908 = vsel %vm176, %v764, 0.0
    %909 = vadd.xlane.f32.xlu0 %v908
    %v910 = vpop.xlane.xlu0 %909
    %v911 = vsel %vm176, %v765, 0.0
    %912 = vadd.xlane.f32.xlu0 %v911
    %v913 = vpop.xlane.xlu0 %912
    %v914 = vsel %vm176, %v766, 0.0
    %915 = vadd.xlane.f32.xlu0 %v914
    %v916 = vpop.xlane.xlu0 %915
    %v917 = vsel %vm176, %v767, 0.0
    %918 = vadd.xlane.f32.xlu0 %v917
    %v919 = vpop.xlane.xlu0 %918
    %v920 = vsel %vm176, %v768, 0.0
    %921 = vadd.xlane.f32.xlu0 %v920
    %v922 = vpop.xlane.xlu0 %921
    %v923 = vsel %vm176, %v769, 0.0
    %924 = vadd.xlane.f32.xlu0 %v923
    %v925 = vpop.xlane.xlu0 %924
    %v926 = vsel %vm176, %v770, 0.0
    %927 = vadd.xlane.f32.xlu0 %v926
    %v928 = vpop.xlane.xlu0 %927
    %v929 = vsel %vm176, %v771, 0.0
    %930 = vadd.xlane.f32.xlu0 %v929
    %v931 = vpop.xlane.xlu0 %930
    %v932 = vsel %vm176, %v772, 0.0
    %933 = vadd.xlane.f32.xlu0 %v932
    %v934 = vpop.xlane.xlu0 %933
    %v935 = vsel %vm176, %v773, 0.0
    %936 = vadd.xlane.f32.xlu0 %v935
    %v937 = vpop.xlane.xlu0 %936
    %v938 = vsel %vm176, %v774, 0.0
    %939 = vadd.xlane.f32.xlu0 %v938
    %v940 = vpop.xlane.xlu0 %939
    %v941 = vsel %vm176, %v775, 0.0
    %942 = vadd.xlane.f32.xlu0 %v941
    %v943 = vpop.xlane.xlu0 %942
    %v944 = vsel %vm176, %v776, 0.0
    %945 = vadd.xlane.f32.xlu0 %v944
    %v946 = vpop.xlane.xlu0 %945
    %v947 = vsel %vm176, %v777, 0.0
    %948 = vadd.xlane.f32.xlu0 %v947
    %v949 = vpop.xlane.xlu0 %948
    %v950 = vsel %vm176, %v778, 0.0
    %951 = vadd.xlane.f32.xlu0 %v950
    %v952 = vpop.xlane.xlu0 %951
    %v953 = vsel %vm176, %v779, 0.0
    %954 = vadd.xlane.f32.xlu0 %v953
    %v955 = vpop.xlane.xlu0 %954
    %v956 = vsel %vm176, %v780, 0.0
    %957 = vadd.xlane.f32.xlu0 %v956
    %v958 = vpop.xlane.xlu0 %957
    %v959 = vsel %vm176, %v781, 0.0
    %960 = vadd.xlane.f32.xlu0 %v959
    %v961 = vpop.xlane.xlu0 %960
    %v962 = vsel %vm176, %v782, 0.0
    %963 = vadd.xlane.f32.xlu0 %v962
    %v964 = vpop.xlane.xlu0 %963
    %v965 = vsel %vm176, %v783, 0.0
    %966 = vadd.xlane.f32.xlu0 %v965
    %v967 = vpop.xlane.xlu0 %966
    %v968 = vsel %vm176, %v784, 0.0
    %969 = vadd.xlane.f32.xlu0 %v968
    %v970 = vpop.xlane.xlu0 %969
    %v971 = vsel %vm176, %v785, 0.0
    %972 = vadd.xlane.f32.xlu0 %v971
    %v973 = vpop.xlane.xlu0 %972
    %v974 = vsel %vm176, %v786, 0.0
    %975 = vadd.xlane.f32.xlu0 %v974
    %v976 = vpop.xlane.xlu0 %975
    %v977 = vsel %vm176, %v787, 0.0
    %978 = vadd.xlane.f32.xlu0 %v977
    %v979 = vpop.xlane.xlu0 %978
    %v1044 = vlaneseq
    %v1045 = vand.u32 %v1044, 127
    %v1046 = vperm.slane %v790, %v1045
    %v1047 = vadd.s32 %v1045, 4294967288
    %v1048 = vperm.slane %v793, %v1047
    %vm1049 = vcmask 130112
    %v1050 = vsel %vm1049, %v1048, %v1046
    %v1051 = vperm.slane %v796, %v1045
    %v1052 = vperm.slane %v799, %v1047
    %v1053 = vsel %vm1049, %v1052, %v1051
    %v1054 = vperm.slane %v802, %v1045
    %v1055 = vperm.slane %v805, %v1047
    %v1056 = vsel %vm1049, %v1055, %v1054
    %v1057 = vperm.slane %v808, %v1045
    %v1058 = vperm.slane %v811, %v1047
    %v1059 = vsel %vm1049, %v1058, %v1057
    %v1060 = vperm.slane %v814, %v1045
    %v1061 = vperm.slane %v817, %v1047
    %v1062 = vsel %vm1049, %v1061, %v1060
    %v1063 = vperm.slane %v820, %v1045
    %v1064 = vperm.slane %v823, %v1047
    %v1065 = vsel %vm1049, %v1064, %v1063
    %v1066 = vperm.slane %v826, %v1045
    %v1067 = vperm.slane %v829, %v1047
    %v1068 = vsel %vm1049, %v1067, %v1066
    %v1069 = vperm.slane %v832, %v1045
    %v1070 = vperm.slane %v835, %v1047
    %v1071 = vsel %vm1049, %v1070, %v1069
    %v1072 = vperm.slane %v838, %v1045
    %v1073 = vperm.slane %v841, %v1047
    %v1074 = vsel %vm1049, %v1073, %v1072
    %v1075 = vperm.slane %v844, %v1045
    %v1076 = vperm.slane %v847, %v1047
    %v1077 = vsel %vm1049, %v1076, %v1075
    %v1078 = vperm.slane %v850, %v1045
    %v1079 = vperm.slane %v853, %v1047
    %v1080 = vsel %vm1049, %v1079, %v1078
    %v1081 = vperm.slane %v856, %v1045
    %v1082 = vperm.slane %v859, %v1047
    %v1083 = vsel %vm1049, %v1082, %v1081
    %v1084 = vperm.slane %v862, %v1045
    %v1085 = vperm.slane %v865, %v1047
    %v1086 = vsel %vm1049, %v1085, %v1084
    %v1087 = vperm.slane %v868, %v1045
    %v1088 = vperm.slane %v871, %v1047
    %v1089 = vsel %vm1049, %v1088, %v1087
    %v1090 = vperm.slane %v874, %v1045
    %v1091 = vperm.slane %v877, %v1047
    %v1092 = vsel %vm1049, %v1091, %v1090
    %v1093 = vperm.slane %v880, %v1045
    %v1094 = vperm.slane %v883, %v1047
    %v1095 = vsel %vm1049, %v1094, %v1093
    %v1096 = vperm.slane %v886, %v1045
    %v1097 = vperm.slane %v889, %v1047
    %v1098 = vsel %vm1049, %v1097, %v1096
    %v1099 = vperm.slane %v892, %v1045
    %v1100 = vperm.slane %v895, %v1047
    %v1101 = vsel %vm1049, %v1100, %v1099
    %v1102 = vperm.slane %v898, %v1045
    %v1103 = vperm.slane %v901, %v1047
    %v1104 = vsel %vm1049, %v1103, %v1102
    %v1105 = vperm.slane %v904, %v1045
    %v1106 = vperm.slane %v907, %v1047
    %v1107 = vsel %vm1049, %v1106, %v1105
    %v1108 = vperm.slane %v910, %v1045
    %v1109 = vperm.slane %v913, %v1047
    %v1110 = vsel %vm1049, %v1109, %v1108
    %v1111 = vperm.slane %v916, %v1045
    %v1112 = vperm.slane %v919, %v1047
    %v1113 = vsel %vm1049, %v1112, %v1111
    %v1114 = vperm.slane %v922, %v1045
    %v1115 = vperm.slane %v925, %v1047
    %v1116 = vsel %vm1049, %v1115, %v1114
    %v1117 = vperm.slane %v928, %v1045
    %v1118 = vperm.slane %v931, %v1047
    %v1119 = vsel %vm1049, %v1118, %v1117
    %v1120 = vperm.slane %v934, %v1045
    %v1121 = vperm.slane %v937, %v1047
    %v1122 = vsel %vm1049, %v1121, %v1120
    %v1123 = vperm.slane %v940, %v1045
    %v1124 = vperm.slane %v943, %v1047
    %v1125 = vsel %vm1049, %v1124, %v1123
    %v1126 = vperm.slane %v946, %v1045
    %v1127 = vperm.slane %v949, %v1047
    %v1128 = vsel %vm1049, %v1127, %v1126
    %v1129 = vperm.slane %v952, %v1045
    %v1130 = vperm.slane %v955, %v1047
    %v1131 = vsel %vm1049, %v1130, %v1129
    %v1132 = vperm.slane %v958, %v1045
    %v1133 = vperm.slane %v961, %v1047
    %v1134 = vsel %vm1049, %v1133, %v1132
    %v1135 = vperm.slane %v964, %v1045
    %v1136 = vperm.slane %v967, %v1047
    %v1137 = vsel %vm1049, %v1136, %v1135
    %v1138 = vperm.slane %v970, %v1045
    %v1139 = vperm.slane %v973, %v1047
    %v1140 = vsel %vm1049, %v1139, %v1138
    %v1141 = vperm.slane %v976, %v1045
    %v1142 = vperm.slane %v979, %v1047
    %v1143 = vsel %vm1049, %v1142, %v1141
    %vm1144 = vcmask 1041409
    %v1145 = vsel %vm1144, %v1053, %v1050
    %vm1146 = vcmask 1042434
    %v1147 = vsel %vm1146, %v1056, %v1145
    %vm1148 = vcmask 1043459
    %v1149 = vsel %vm1148, %v1059, %v1147
    %vm1150 = vcmask 1044484
    %v1151 = vsel %vm1150, %v1062, %v1149
    %vm1152 = vcmask 1045509
    %v1153 = vsel %vm1152, %v1065, %v1151
    %vm1154 = vcmask 1046534
    %v1155 = vsel %vm1154, %v1068, %v1153
    %vm1156 = vcmask 1047559
    %v1157 = vsel %vm1156, %v1071, %v1155
    %v1158 = vsel %vm1144, %v1077, %v1074
    %v1159 = vsel %vm1146, %v1080, %v1158
    %v1160 = vsel %vm1148, %v1083, %v1159
    %v1161 = vsel %vm1150, %v1086, %v1160
    %v1162 = vsel %vm1152, %v1089, %v1161
    %v1163 = vsel %vm1154, %v1092, %v1162
    %v1164 = vsel %vm1156, %v1095, %v1163
    %v1165 = vsel %vm1144, %v1101, %v1098
    %v1166 = vsel %vm1146, %v1104, %v1165
    %v1167 = vsel %vm1148, %v1107, %v1166
    %v1168 = vsel %vm1150, %v1110, %v1167
    %v1169 = vsel %vm1152, %v1113, %v1168
    %v1170 = vsel %vm1154, %v1116, %v1169
    %v1171 = vsel %vm1156, %v1119, %v1170
    %v1172 = vsel %vm1144, %v1125, %v1122
    %v1173 = vsel %vm1146, %v1128, %v1172
    %v1174 = vsel %vm1148, %v1131, %v1173
    %v1175 = vsel %vm1150, %v1134, %v1174
    %v1176 = vsel %vm1152, %v1137, %v1175
    %v1177 = vsel %vm1154, %v1140, %v1176
    %v1178 = vsel %vm1156, %v1143, %v1177
    %vm1183 = vcmask 130048
    %v1184 = vsel %vm1183, %v1157, -inf
    %1185 = vmax.xlane.f32.xlu0 %v1184
    %v1186 = vpop.xlane.xlu0 %1185
    %v1187 = vsel %vm1183, %v1164, -inf
    %1188 = vmax.xlane.f32.xlu0 %v1187
    %v1189 = vpop.xlane.xlu0 %1188
    %v1190 = vsel %vm1183, %v1171, -inf
    %1191 = vmax.xlane.f32.xlu0 %v1190
    %v1192 = vpop.xlane.xlu0 %1191
    %v1193 = vsel %vm1183, %v1178, -inf
    %1194 = vmax.xlane.f32.xlu0 %v1193
    %v1195 = vpop.xlane.xlu0 %1194
    %v1200 = vperm.slane %v1186, 0
    %v1201 = vperm.slane %v1186, 1
    %v1202 = vperm.slane %v1186, 2
    %v1203 = vperm.slane %v1186, 3
    %v1204 = vperm.slane %v1186, 4
    %v1205 = vperm.slane %v1186, 5
    %v1206 = vperm.slane %v1186, 6
    %v1207 = vperm.slane %v1186, 7
    %v1208 = vperm.slane %v1189, 0
    %v1209 = vperm.slane %v1189, 1
    %v1210 = vperm.slane %v1189, 2
    %v1211 = vperm.slane %v1189, 3
    %v1212 = vperm.slane %v1189, 4
    %v1213 = vperm.slane %v1189, 5
    %v1214 = vperm.slane %v1189, 6
    %v1215 = vperm.slane %v1189, 7
    %v1216 = vperm.slane %v1192, 0
    %v1217 = vperm.slane %v1192, 1
    %v1218 = vperm.slane %v1192, 2
    %v1219 = vperm.slane %v1192, 3
    %v1220 = vperm.slane %v1192, 4
    %v1221 = vperm.slane %v1192, 5
    %v1222 = vperm.slane %v1192, 6
    %v1223 = vperm.slane %v1192, 7
    %v1224 = vperm.slane %v1195, 0
    %v1225 = vperm.slane %v1195, 1
    %v1226 = vperm.slane %v1195, 2
    %v1227 = vperm.slane %v1195, 3
    %v1228 = vperm.slane %v1195, 4
    %v1229 = vperm.slane %v1195, 5
    %v1230 = vperm.slane %v1195, 6
    %v1231 = vperm.slane %v1195, 7
    %v1264 = vsub.f32 %v790, %v1200
    %v1265 = vsub.f32 %v793, %v1200
    %v1266 = vsub.f32 %v796, %v1201
    %v1267 = vsub.f32 %v799, %v1201
    %v1268 = vsub.f32 %v802, %v1202
    %v1269 = vsub.f32 %v805, %v1202
    %v1270 = vsub.f32 %v808, %v1203
    %v1271 = vsub.f32 %v811, %v1203
    %v1272 = vsub.f32 %v814, %v1204
    %v1273 = vsub.f32 %v817, %v1204
    %v1274 = vsub.f32 %v820, %v1205
    %v1275 = vsub.f32 %v823, %v1205
    %v1276 = vsub.f32 %v826, %v1206
    %v1277 = vsub.f32 %v829, %v1206
    %v1278 = vsub.f32 %v832, %v1207
    %v1279 = vsub.f32 %v835, %v1207
    %v1280 = vsub.f32 %v838, %v1208
    %v1281 = vsub.f32 %v841, %v1208
    %v1282 = vsub.f32 %v844, %v1209
    %v1283 = vsub.f32 %v847, %v1209
    %v1284 = vsub.f32 %v850, %v1210
    %v1285 = vsub.f32 %v853, %v1210
    %v1286 = vsub.f32 %v856, %v1211
    %v1287 = vsub.f32 %v859, %v1211
    %v1288 = vsub.f32 %v862, %v1212
    %v1289 = vsub.f32 %v865, %v1212
    %v1290 = vsub.f32 %v868, %v1213
    %v1291 = vsub.f32 %v871, %v1213
    %v1292 = vsub.f32 %v874, %v1214
    %v1293 = vsub.f32 %v877, %v1214
    %v1294 = vsub.f32 %v880, %v1215
    %v1295 = vsub.f32 %v883, %v1215
    %v1296 = vsub.f32 %v886, %v1216
    %v1297 = vsub.f32 %v889, %v1216
    %v1298 = vsub.f32 %v892, %v1217
    %v1299 = vsub.f32 %v895, %v1217
    %v1300 = vsub.f32 %v898, %v1218
    %v1301 = vsub.f32 %v901, %v1218
    %v1302 = vsub.f32 %v904, %v1219
    %v1303 = vsub.f32 %v907, %v1219
    %v1304 = vsub.f32 %v910, %v1220
    %v1305 = vsub.f32 %v913, %v1220
    %v1306 = vsub.f32 %v916, %v1221
    %v1307 = vsub.f32 %v919, %v1221
    %v1308 = vsub.f32 %v922, %v1222
    %v1309 = vsub.f32 %v925, %v1222
    %v1310 = vsub.f32 %v928, %v1223
    %v1311 = vsub.f32 %v931, %v1223
    %v1312 = vsub.f32 %v934, %v1224
    %v1313 = vsub.f32 %v937, %v1224
    %v1314 = vsub.f32 %v940, %v1225
    %v1315 = vsub.f32 %v943, %v1225
    %v1316 = vsub.f32 %v946, %v1226
    %v1317 = vsub.f32 %v949, %v1226
    %v1318 = vsub.f32 %v952, %v1227
    %v1319 = vsub.f32 %v955, %v1227
    %v1320 = vsub.f32 %v958, %v1228
    %v1321 = vsub.f32 %v961, %v1228
    %v1322 = vsub.f32 %v964, %v1229
    %v1323 = vsub.f32 %v967, %v1229
    %v1324 = vsub.f32 %v970, %v1230
    %v1325 = vsub.f32 %v973, %v1230
    %v1326 = vsub.f32 %v976, %v1231
    %v1327 = vsub.f32 %v979, %v1231
    %v1328 = vmul.f32 %v1264, 1.442695
    %v1329 = vpow.pop %v1328
    %v1330 = vmul.f32 %v1265, 1.442695
    %v1331 = vpow.pop %v1330
    %v1332 = vmul.f32 %v1266, 1.442695
    %v1333 = vpow.pop %v1332
    %v1334 = vmul.f32 %v1267, 1.442695
    %v1335 = vpow.pop %v1334
    %v1336 = vmul.f32 %v1268, 1.442695
    %v1337 = vpow.pop %v1336
    %v1338 = vmul.f32 %v1269, 1.442695
    %v1339 = vpow.pop %v1338
    %v1340 = vmul.f32 %v1270, 1.442695
    %v1341 = vpow.pop %v1340
    %v1342 = vmul.f32 %v1271, 1.442695
    %v1343 = vpow.pop %v1342
    %v1344 = vmul.f32 %v1272, 1.442695
    %v1345 = vpow.pop %v1344
    %v1346 = vmul.f32 %v1273, 1.442695
    %v1347 = vpow.pop %v1346
    %v1348 = vmul.f32 %v1274, 1.442695
    %v1349 = vpow.pop %v1348
    %v1350 = vmul.f32 %v1275, 1.442695
    %v1351 = vpow.pop %v1350
    %v1352 = vmul.f32 %v1276, 1.442695
    %v1353 = vpow.pop %v1352
    %v1354 = vmul.f32 %v1277, 1.442695
    %v1355 = vpow.pop %v1354
    %v1356 = vmul.f32 %v1278, 1.442695
    %v1357 = vpow.pop %v1356
    %v1358 = vmul.f32 %v1279, 1.442695
    %v1359 = vpow.pop %v1358
    %v1360 = vmul.f32 %v1280, 1.442695
    %v1361 = vpow.pop %v1360
    %v1362 = vmul.f32 %v1281, 1.442695
    %v1363 = vpow.pop %v1362
    %v1364 = vmul.f32 %v1282, 1.442695
    %v1365 = vpow.pop %v1364
    %v1366 = vmul.f32 %v1283, 1.442695
    %v1367 = vpow.pop %v1366
    %v1368 = vmul.f32 %v1284, 1.442695
    %v1369 = vpow.pop %v1368
    %v1370 = vmul.f32 %v1285, 1.442695
    %v1371 = vpow.pop %v1370
    %v1372 = vmul.f32 %v1286, 1.442695
    %v1373 = vpow.pop %v1372
    %v1374 = vmul.f32 %v1287, 1.442695
    %v1375 = vpow.pop %v1374
    %v1376 = vmul.f32 %v1288, 1.442695
    %v1377 = vpow.pop %v1376
    %v1378 = vmul.f32 %v1289, 1.442695
    %v1379 = vpow.pop %v1378
    %v1380 = vmul.f32 %v1290, 1.442695
    %v1381 = vpow.pop %v1380
    %v1382 = vmul.f32 %v1291, 1.442695
    %v1383 = vpow.pop %v1382
    %v1384 = vmul.f32 %v1292, 1.442695
    %v1385 = vpow.pop %v1384
    %v1386 = vmul.f32 %v1293, 1.442695
    %v1387 = vpow.pop %v1386
    %v1388 = vmul.f32 %v1294, 1.442695
    %v1389 = vpow.pop %v1388
    %v1390 = vmul.f32 %v1295, 1.442695
    %v1391 = vpow.pop %v1390
    %v1392 = vmul.f32 %v1296, 1.442695
    %v1393 = vpow.pop %v1392
    %v1394 = vmul.f32 %v1297, 1.442695
    %v1395 = vpow.pop %v1394
    %v1396 = vmul.f32 %v1298, 1.442695
    %v1397 = vpow.pop %v1396
    %v1398 = vmul.f32 %v1299, 1.442695
    %v1399 = vpow.pop %v1398
    %v1400 = vmul.f32 %v1300, 1.442695
    %v1401 = vpow.pop %v1400
    %v1402 = vmul.f32 %v1301, 1.442695
    %v1403 = vpow.pop %v1402
    %v1404 = vmul.f32 %v1302, 1.442695
    %v1405 = vpow.pop %v1404
    %v1406 = vmul.f32 %v1303, 1.442695
    %v1407 = vpow.pop %v1406
    %v1408 = vmul.f32 %v1304, 1.442695
    %v1409 = vpow.pop %v1408
    %v1410 = vmul.f32 %v1305, 1.442695
    %v1411 = vpow.pop %v1410
    %v1412 = vmul.f32 %v1306, 1.442695
    %v1413 = vpow.pop %v1412
    %v1414 = vmul.f32 %v1307, 1.442695
    %v1415 = vpow.pop %v1414
    %v1416 = vmul.f32 %v1308, 1.442695
    %v1417 = vpow.pop %v1416
    %v1418 = vmul.f32 %v1309, 1.442695
    %v1419 = vpow.pop %v1418
    %v1420 = vmul.f32 %v1310, 1.442695
    %v1421 = vpow.pop %v1420
    %v1422 = vmul.f32 %v1311, 1.442695
    %v1423 = vpow.pop %v1422
    %v1424 = vmul.f32 %v1312, 1.442695
    %v1425 = vpow.pop %v1424
    %v1426 = vmul.f32 %v1313, 1.442695
    %v1427 = vpow.pop %v1426
    %v1428 = vmul.f32 %v1314, 1.442695
    %v1429 = vpow.pop %v1428
    %v1430 = vmul.f32 %v1315, 1.442695
    %v1431 = vpow.pop %v1430
    %v1432 = vmul.f32 %v1316, 1.442695
    %v1433 = vpow.pop %v1432
    %v1434 = vmul.f32 %v1317, 1.442695
    %v1435 = vpow.pop %v1434
    %v1436 = vmul.f32 %v1318, 1.442695
    %v1437 = vpow.pop %v1436
    %v1438 = vmul.f32 %v1319, 1.442695
    %v1439 = vpow.pop %v1438
    %v1440 = vmul.f32 %v1320, 1.442695
    %v1441 = vpow.pop %v1440
    %v1442 = vmul.f32 %v1321, 1.442695
    %v1443 = vpow.pop %v1442
    %v1444 = vmul.f32 %v1322, 1.442695
    %v1445 = vpow.pop %v1444
    %v1446 = vmul.f32 %v1323, 1.442695
    %v1447 = vpow.pop %v1446
    %v1448 = vmul.f32 %v1324, 1.442695
    %v1449 = vpow.pop %v1448
    %v1450 = vmul.f32 %v1325, 1.442695
    %v1451 = vpow.pop %v1450
    %v1452 = vmul.f32 %v1326, 1.442695
    %v1453 = vpow.pop %v1452
    %v1454 = vmul.f32 %v1327, 1.442695
    %v1455 = vpow.pop %v1454
    %1520 = vset.pattern.permute.xlu0 0
    %1521 = vperm.xlu0 %1520, %v1329
    %v1522 = vpop.permute.xlu0 %1521
    %1523 = vset.pattern.permute.xlu0 0
    %1524 = vperm.xlu0 %1523, %v1331
    %v1525 = vpop.permute.xlu0 %1524
    %1526 = vset.pattern.permute.xlu0 0
    %1527 = vperm.xlu0 %1526, %v1333
    %v1528 = vpop.permute.xlu0 %1527
    %1529 = vset.pattern.permute.xlu0 0
    %1530 = vperm.xlu0 %1529, %v1335
    %v1531 = vpop.permute.xlu0 %1530
    %1532 = vset.pattern.permute.xlu0 0
    %1533 = vperm.xlu0 %1532, %v1337
    %v1534 = vpop.permute.xlu0 %1533
    %1535 = vset.pattern.permute.xlu0 0
    %1536 = vperm.xlu0 %1535, %v1339
    %v1537 = vpop.permute.xlu0 %1536
    %1538 = vset.pattern.permute.xlu0 0
    %1539 = vperm.xlu0 %1538, %v1341
    %v1540 = vpop.permute.xlu0 %1539
    %1541 = vset.pattern.permute.xlu0 0
    %1542 = vperm.xlu0 %1541, %v1343
    %v1543 = vpop.permute.xlu0 %1542
    %1544 = vset.pattern.permute.xlu0 0
    %1545 = vperm.xlu0 %1544, %v1345
    %v1546 = vpop.permute.xlu0 %1545
    %1547 = vset.pattern.permute.xlu0 0
    %1548 = vperm.xlu0 %1547, %v1347
    %v1549 = vpop.permute.xlu0 %1548
    %1550 = vset.pattern.permute.xlu0 0
    %1551 = vperm.xlu0 %1550, %v1349
    %v1552 = vpop.permute.xlu0 %1551
    %1553 = vset.pattern.permute.xlu0 0
    %1554 = vperm.xlu0 %1553, %v1351
    %v1555 = vpop.permute.xlu0 %1554
    %1556 = vset.pattern.permute.xlu0 0
    %1557 = vperm.xlu0 %1556, %v1353
    %v1558 = vpop.permute.xlu0 %1557
    %1559 = vset.pattern.permute.xlu0 0
    %1560 = vperm.xlu0 %1559, %v1355
    %v1561 = vpop.permute.xlu0 %1560
    %1562 = vset.pattern.permute.xlu0 0
    %1563 = vperm.xlu0 %1562, %v1357
    %v1564 = vpop.permute.xlu0 %1563
    %1565 = vset.pattern.permute.xlu0 0
    %1566 = vperm.xlu0 %1565, %v1359
    %v1567 = vpop.permute.xlu0 %1566
    %1568 = vset.pattern.permute.xlu0 0
    %1569 = vperm.xlu0 %1568, %v1361
    %v1570 = vpop.permute.xlu0 %1569
    %1571 = vset.pattern.permute.xlu0 0
    %1572 = vperm.xlu0 %1571, %v1363
    %v1573 = vpop.permute.xlu0 %1572
    %1574 = vset.pattern.permute.xlu0 0
    %1575 = vperm.xlu0 %1574, %v1365
    %v1576 = vpop.permute.xlu0 %1575
    %1577 = vset.pattern.permute.xlu0 0
    %1578 = vperm.xlu0 %1577, %v1367
    %v1579 = vpop.permute.xlu0 %1578
    %1580 = vset.pattern.permute.xlu0 0
    %1581 = vperm.xlu0 %1580, %v1369
    %v1582 = vpop.permute.xlu0 %1581
    %1583 = vset.pattern.permute.xlu0 0
    %1584 = vperm.xlu0 %1583, %v1371
    %v1585 = vpop.permute.xlu0 %1584
    %1586 = vset.pattern.permute.xlu0 0
    %1587 = vperm.xlu0 %1586, %v1373
    %v1588 = vpop.permute.xlu0 %1587
    %1589 = vset.pattern.permute.xlu0 0
    %1590 = vperm.xlu0 %1589, %v1375
    %v1591 = vpop.permute.xlu0 %1590
    %1592 = vset.pattern.permute.xlu0 0
    %1593 = vperm.xlu0 %1592, %v1377
    %v1594 = vpop.permute.xlu0 %1593
    %1595 = vset.pattern.permute.xlu0 0
    %1596 = vperm.xlu0 %1595, %v1379
    %v1597 = vpop.permute.xlu0 %1596
    %1598 = vset.pattern.permute.xlu0 0
    %1599 = vperm.xlu0 %1598, %v1381
    %v1600 = vpop.permute.xlu0 %1599
    %1601 = vset.pattern.permute.xlu0 0
    %1602 = vperm.xlu0 %1601, %v1383
    %v1603 = vpop.permute.xlu0 %1602
    %1604 = vset.pattern.permute.xlu0 0
    %1605 = vperm.xlu0 %1604, %v1385
    %v1606 = vpop.permute.xlu0 %1605
    %1607 = vset.pattern.permute.xlu0 0
    %1608 = vperm.xlu0 %1607, %v1387
    %v1609 = vpop.permute.xlu0 %1608
    %1610 = vset.pattern.permute.xlu0 0
    %1611 = vperm.xlu0 %1610, %v1389
    %v1612 = vpop.permute.xlu0 %1611
    %1613 = vset.pattern.permute.xlu0 0
    %1614 = vperm.xlu0 %1613, %v1391
    %v1615 = vpop.permute.xlu0 %1614
    %1616 = vset.pattern.permute.xlu0 0
    %1617 = vperm.xlu0 %1616, %v1393
    %v1618 = vpop.permute.xlu0 %1617
    %1619 = vset.pattern.permute.xlu0 0
    %1620 = vperm.xlu0 %1619, %v1395
    %v1621 = vpop.permute.xlu0 %1620
    %1622 = vset.pattern.permute.xlu0 0
    %1623 = vperm.xlu0 %1622, %v1397
    %v1624 = vpop.permute.xlu0 %1623
    %1625 = vset.pattern.permute.xlu0 0
    %1626 = vperm.xlu0 %1625, %v1399
    %v1627 = vpop.permute.xlu0 %1626
    %1628 = vset.pattern.permute.xlu0 0
    %1629 = vperm.xlu0 %1628, %v1401
    %v1630 = vpop.permute.xlu0 %1629
    %1631 = vset.pattern.permute.xlu0 0
    %1632 = vperm.xlu0 %1631, %v1403
    %v1633 = vpop.permute.xlu0 %1632
    %1634 = vset.pattern.permute.xlu0 0
    %1635 = vperm.xlu0 %1634, %v1405
    %v1636 = vpop.permute.xlu0 %1635
    %1637 = vset.pattern.permute.xlu0 0
    %1638 = vperm.xlu0 %1637, %v1407
    %v1639 = vpop.permute.xlu0 %1638
    %1640 = vset.pattern.permute.xlu0 0
    %1641 = vperm.xlu0 %1640, %v1409
    %v1642 = vpop.permute.xlu0 %1641
    %1643 = vset.pattern.permute.xlu0 0
    %1644 = vperm.xlu0 %1643, %v1411
    %v1645 = vpop.permute.xlu0 %1644
    %1646 = vset.pattern.permute.xlu0 0
    %1647 = vperm.xlu0 %1646, %v1413
    %v1648 = vpop.permute.xlu0 %1647
    %1649 = vset.pattern.permute.xlu0 0
    %1650 = vperm.xlu0 %1649, %v1415
    %v1651 = vpop.permute.xlu0 %1650
    %1652 = vset.pattern.permute.xlu0 0
    %1653 = vperm.xlu0 %1652, %v1417
    %v1654 = vpop.permute.xlu0 %1653
    %1655 = vset.pattern.permute.xlu0 0
    %1656 = vperm.xlu0 %1655, %v1419
    %v1657 = vpop.permute.xlu0 %1656
    %1658 = vset.pattern.permute.xlu0 0
    %1659 = vperm.xlu0 %1658, %v1421
    %v1660 = vpop.permute.xlu0 %1659
    %1661 = vset.pattern.permute.xlu0 0
    %1662 = vperm.xlu0 %1661, %v1423
    %v1663 = vpop.permute.xlu0 %1662
    %1664 = vset.pattern.permute.xlu0 0
    %1665 = vperm.xlu0 %1664, %v1425
    %v1666 = vpop.permute.xlu0 %1665
    %1667 = vset.pattern.permute.xlu0 0
    %1668 = vperm.xlu0 %1667, %v1427
    %v1669 = vpop.permute.xlu0 %1668
    %1670 = vset.pattern.permute.xlu0 0
    %1671 = vperm.xlu0 %1670, %v1429
    %v1672 = vpop.permute.xlu0 %1671
    %1673 = vset.pattern.permute.xlu0 0
    %1674 = vperm.xlu0 %1673, %v1431
    %v1675 = vpop.permute.xlu0 %1674
    %1676 = vset.pattern.permute.xlu0 0
    %1677 = vperm.xlu0 %1676, %v1433
    %v1678 = vpop.permute.xlu0 %1677
    %1679 = vset.pattern.permute.xlu0 0
    %1680 = vperm.xlu0 %1679, %v1435
    %v1681 = vpop.permute.xlu0 %1680
    %1682 = vset.pattern.permute.xlu0 0
    %1683 = vperm.xlu0 %1682, %v1437
    %v1684 = vpop.permute.xlu0 %1683
    %1685 = vset.pattern.permute.xlu0 0
    %1686 = vperm.xlu0 %1685, %v1439
    %v1687 = vpop.permute.xlu0 %1686
    %1688 = vset.pattern.permute.xlu0 0
    %1689 = vperm.xlu0 %1688, %v1441
    %v1690 = vpop.permute.xlu0 %1689
    %1691 = vset.pattern.permute.xlu0 0
    %1692 = vperm.xlu0 %1691, %v1443
    %v1693 = vpop.permute.xlu0 %1692
    %1694 = vset.pattern.permute.xlu0 0
    %1695 = vperm.xlu0 %1694, %v1445
    %v1696 = vpop.permute.xlu0 %1695
    %1697 = vset.pattern.permute.xlu0 0
    %1698 = vperm.xlu0 %1697, %v1447
    %v1699 = vpop.permute.xlu0 %1698
    %1700 = vset.pattern.permute.xlu0 0
    %1701 = vperm.xlu0 %1700, %v1449
    %v1702 = vpop.permute.xlu0 %1701
    %1703 = vset.pattern.permute.xlu0 0
    %1704 = vperm.xlu0 %1703, %v1451
    %v1705 = vpop.permute.xlu0 %1704
    %1706 = vset.pattern.permute.xlu0 0
    %1707 = vperm.xlu0 %1706, %v1453
    %v1708 = vpop.permute.xlu0 %1707
    %1709 = vset.pattern.permute.xlu0 0
    %1710 = vperm.xlu0 %1709, %v1455
    %v1711 = vpop.permute.xlu0 %1710
    %v1712 = vperm.slane %v1522, %v1045
    %v1713 = vperm.slane %v1525, %v1047
    %v1714 = vsel %vm1049, %v1713, %v1712
    %v1715 = vperm.slane %v1528, %v1045
    %v1716 = vperm.slane %v1531, %v1047
    %v1717 = vsel %vm1049, %v1716, %v1715
    %v1718 = vperm.slane %v1534, %v1045
    %v1719 = vperm.slane %v1537, %v1047
    %v1720 = vsel %vm1049, %v1719, %v1718
    %v1721 = vperm.slane %v1540, %v1045
    %v1722 = vperm.slane %v1543, %v1047
    %v1723 = vsel %vm1049, %v1722, %v1721
    %v1724 = vperm.slane %v1546, %v1045
    %v1725 = vperm.slane %v1549, %v1047
    %v1726 = vsel %vm1049, %v1725, %v1724
    %v1727 = vperm.slane %v1552, %v1045
    %v1728 = vperm.slane %v1555, %v1047
    %v1729 = vsel %vm1049, %v1728, %v1727
    %v1730 = vperm.slane %v1558, %v1045
    %v1731 = vperm.slane %v1561, %v1047
    %v1732 = vsel %vm1049, %v1731, %v1730
    %v1733 = vperm.slane %v1564, %v1045
    %v1734 = vperm.slane %v1567, %v1047
    %v1735 = vsel %vm1049, %v1734, %v1733
    %v1736 = vperm.slane %v1570, %v1045
    %v1737 = vperm.slane %v1573, %v1047
    %v1738 = vsel %vm1049, %v1737, %v1736
    %v1739 = vperm.slane %v1576, %v1045
    %v1740 = vperm.slane %v1579, %v1047
    %v1741 = vsel %vm1049, %v1740, %v1739
    %v1742 = vperm.slane %v1582, %v1045
    %v1743 = vperm.slane %v1585, %v1047
    %v1744 = vsel %vm1049, %v1743, %v1742
    %v1745 = vperm.slane %v1588, %v1045
    %v1746 = vperm.slane %v1591, %v1047
    %v1747 = vsel %vm1049, %v1746, %v1745
    %v1748 = vperm.slane %v1594, %v1045
    %v1749 = vperm.slane %v1597, %v1047
    %v1750 = vsel %vm1049, %v1749, %v1748
    %v1751 = vperm.slane %v1600, %v1045
    %v1752 = vperm.slane %v1603, %v1047
    %v1753 = vsel %vm1049, %v1752, %v1751
    %v1754 = vperm.slane %v1606, %v1045
    %v1755 = vperm.slane %v1609, %v1047
    %v1756 = vsel %vm1049, %v1755, %v1754
    %v1757 = vperm.slane %v1612, %v1045
    %v1758 = vperm.slane %v1615, %v1047
    %v1759 = vsel %vm1049, %v1758, %v1757
    %v1760 = vperm.slane %v1618, %v1045
    %v1761 = vperm.slane %v1621, %v1047
    %v1762 = vsel %vm1049, %v1761, %v1760
    %v1763 = vperm.slane %v1624, %v1045
    %v1764 = vperm.slane %v1627, %v1047
    %v1765 = vsel %vm1049, %v1764, %v1763
    %v1766 = vperm.slane %v1630, %v1045
    %v1767 = vperm.slane %v1633, %v1047
    %v1768 = vsel %vm1049, %v1767, %v1766
    %v1769 = vperm.slane %v1636, %v1045
    %v1770 = vperm.slane %v1639, %v1047
    %v1771 = vsel %vm1049, %v1770, %v1769
    %v1772 = vperm.slane %v1642, %v1045
    %v1773 = vperm.slane %v1645, %v1047
    %v1774 = vsel %vm1049, %v1773, %v1772
    %v1775 = vperm.slane %v1648, %v1045
    %v1776 = vperm.slane %v1651, %v1047
    %v1777 = vsel %vm1049, %v1776, %v1775
    %v1778 = vperm.slane %v1654, %v1045
    %v1779 = vperm.slane %v1657, %v1047
    %v1780 = vsel %vm1049, %v1779, %v1778
    %v1781 = vperm.slane %v1660, %v1045
    %v1782 = vperm.slane %v1663, %v1047
    %v1783 = vsel %vm1049, %v1782, %v1781
    %v1784 = vperm.slane %v1666, %v1045
    %v1785 = vperm.slane %v1669, %v1047
    %v1786 = vsel %vm1049, %v1785, %v1784
    %v1787 = vperm.slane %v1672, %v1045
    %v1788 = vperm.slane %v1675, %v1047
    %v1789 = vsel %vm1049, %v1788, %v1787
    %v1790 = vperm.slane %v1678, %v1045
    %v1791 = vperm.slane %v1681, %v1047
    %v1792 = vsel %vm1049, %v1791, %v1790
    %v1793 = vperm.slane %v1684, %v1045
    %v1794 = vperm.slane %v1687, %v1047
    %v1795 = vsel %vm1049, %v1794, %v1793
    %v1796 = vperm.slane %v1690, %v1045
    %v1797 = vperm.slane %v1693, %v1047
    %v1798 = vsel %vm1049, %v1797, %v1796
    %v1799 = vperm.slane %v1696, %v1045
    %v1800 = vperm.slane %v1699, %v1047
    %v1801 = vsel %vm1049, %v1800, %v1799
    %v1802 = vperm.slane %v1702, %v1045
    %v1803 = vperm.slane %v1705, %v1047
    %v1804 = vsel %vm1049, %v1803, %v1802
    %v1805 = vperm.slane %v1708, %v1045
    %v1806 = vperm.slane %v1711, %v1047
    %v1807 = vsel %vm1049, %v1806, %v1805
    %v1808 = vsel %vm1144, %v1717, %v1714
    %v1809 = vsel %vm1146, %v1720, %v1808
    %v1810 = vsel %vm1148, %v1723, %v1809
    %v1811 = vsel %vm1150, %v1726, %v1810
    %v1812 = vsel %vm1152, %v1729, %v1811
    %v1813 = vsel %vm1154, %v1732, %v1812
    %v1814 = vsel %vm1156, %v1735, %v1813
    %v1815 = vsel %vm1144, %v1741, %v1738
    %v1816 = vsel %vm1146, %v1744, %v1815
    %v1817 = vsel %vm1148, %v1747, %v1816
    %v1818 = vsel %vm1150, %v1750, %v1817
    %v1819 = vsel %vm1152, %v1753, %v1818
    %v1820 = vsel %vm1154, %v1756, %v1819
    %v1821 = vsel %vm1156, %v1759, %v1820
    %v1822 = vsel %vm1144, %v1765, %v1762
    %v1823 = vsel %vm1146, %v1768, %v1822
    %v1824 = vsel %vm1148, %v1771, %v1823
    %v1825 = vsel %vm1150, %v1774, %v1824
    %v1826 = vsel %vm1152, %v1777, %v1825
    %v1827 = vsel %vm1154, %v1780, %v1826
    %v1828 = vsel %vm1156, %v1783, %v1827
    %v1829 = vsel %vm1144, %v1789, %v1786
    %v1830 = vsel %vm1146, %v1792, %v1829
    %v1831 = vsel %vm1148, %v1795, %v1830
    %v1832 = vsel %vm1150, %v1798, %v1831
    %v1833 = vsel %vm1152, %v1801, %v1832
    %v1834 = vsel %vm1154, %v1804, %v1833
    %v1835 = vsel %vm1156, %v1807, %v1834
    %v1840 = vsel %vm1183, %v1814, 0.0
    %1841 = vadd.xlane.f32.xlu0 %v1840
    %v1842 = vpop.xlane.xlu0 %1841
    %v1843 = vsel %vm1183, %v1821, 0.0
    %1844 = vadd.xlane.f32.xlu0 %v1843
    %v1845 = vpop.xlane.xlu0 %1844
    %v1846 = vsel %vm1183, %v1828, 0.0
    %1847 = vadd.xlane.f32.xlu0 %v1846
    %v1848 = vpop.xlane.xlu0 %1847
    %v1849 = vsel %vm1183, %v1835, 0.0
    %1850 = vadd.xlane.f32.xlu0 %v1849
    %v1851 = vpop.xlane.xlu0 %1850
    %v1852 = vrcp.pop %v1842
    %v1853 = vrcp.pop %v1845
    %v1854 = vrcp.pop %v1848
    %v1855 = vrcp.pop %v1851
    %v1860 = vperm.slane %v1852, 0
    %v1861 = vperm.slane %v1852, 1
    %v1862 = vperm.slane %v1852, 2
    %v1863 = vperm.slane %v1852, 3
    %v1864 = vperm.slane %v1852, 4
    %v1865 = vperm.slane %v1852, 5
    %v1866 = vperm.slane %v1852, 6
    %v1867 = vperm.slane %v1852, 7
    %v1868 = vperm.slane %v1853, 0
    %v1869 = vperm.slane %v1853, 1
    %v1870 = vperm.slane %v1853, 2
    %v1871 = vperm.slane %v1853, 3
    %v1872 = vperm.slane %v1853, 4
    %v1873 = vperm.slane %v1853, 5
    %v1874 = vperm.slane %v1853, 6
    %v1875 = vperm.slane %v1853, 7
    %v1876 = vperm.slane %v1854, 0
    %v1877 = vperm.slane %v1854, 1
    %v1878 = vperm.slane %v1854, 2
    %v1879 = vperm.slane %v1854, 3
    %v1880 = vperm.slane %v1854, 4
    %v1881 = vperm.slane %v1854, 5
    %v1882 = vperm.slane %v1854, 6
    %v1883 = vperm.slane %v1854, 7
    %v1884 = vperm.slane %v1855, 0
    %v1885 = vperm.slane %v1855, 1
    %v1886 = vperm.slane %v1855, 2
    %v1887 = vperm.slane %v1855, 3
    %v1888 = vperm.slane %v1855, 4
    %v1889 = vperm.slane %v1855, 5
    %v1890 = vperm.slane %v1855, 6
    %v1891 = vperm.slane %v1855, 7
    %v1924 = vmul.f32 %v1329, %v1860
    %v1925 = vmul.f32 %v1331, %v1860
    %v1926 = vmul.f32 %v1333, %v1861
    %v1927 = vmul.f32 %v1335, %v1861
    %v1928 = vmul.f32 %v1337, %v1862
    %v1929 = vmul.f32 %v1339, %v1862
    %v1930 = vmul.f32 %v1341, %v1863
    %v1931 = vmul.f32 %v1343, %v1863
    %v1932 = vmul.f32 %v1345, %v1864
    %v1933 = vmul.f32 %v1347, %v1864
    %v1934 = vmul.f32 %v1349, %v1865
    %v1935 = vmul.f32 %v1351, %v1865
    %v1936 = vmul.f32 %v1353, %v1866
    %v1937 = vmul.f32 %v1355, %v1866
    %v1938 = vmul.f32 %v1357, %v1867
    %v1939 = vmul.f32 %v1359, %v1867
    %v1940 = vmul.f32 %v1361, %v1868
    %v1941 = vmul.f32 %v1363, %v1868
    %v1942 = vmul.f32 %v1365, %v1869
    %v1943 = vmul.f32 %v1367, %v1869
    %v1944 = vmul.f32 %v1369, %v1870
    %v1945 = vmul.f32 %v1371, %v1870
    %v1946 = vmul.f32 %v1373, %v1871
    %v1947 = vmul.f32 %v1375, %v1871
    %v1948 = vmul.f32 %v1377, %v1872
    %v1949 = vmul.f32 %v1379, %v1872
    %v1950 = vmul.f32 %v1381, %v1873
    %v1951 = vmul.f32 %v1383, %v1873
    %v1952 = vmul.f32 %v1385, %v1874
    %v1953 = vmul.f32 %v1387, %v1874
    %v1954 = vmul.f32 %v1389, %v1875
    %v1955 = vmul.f32 %v1391, %v1875
    %v1956 = vmul.f32 %v1393, %v1876
    %v1957 = vmul.f32 %v1395, %v1876
    %v1958 = vmul.f32 %v1397, %v1877
    %v1959 = vmul.f32 %v1399, %v1877
    %v1960 = vmul.f32 %v1401, %v1878
    %v1961 = vmul.f32 %v1403, %v1878
    %v1962 = vmul.f32 %v1405, %v1879
    %v1963 = vmul.f32 %v1407, %v1879
    %v1964 = vmul.f32 %v1409, %v1880
    %v1965 = vmul.f32 %v1411, %v1880
    %v1966 = vmul.f32 %v1413, %v1881
    %v1967 = vmul.f32 %v1415, %v1881
    %v1968 = vmul.f32 %v1417, %v1882
    %v1969 = vmul.f32 %v1419, %v1882
    %v1970 = vmul.f32 %v1421, %v1883
    %v1971 = vmul.f32 %v1423, %v1883
    %v1972 = vmul.f32 %v1425, %v1884
    %v1973 = vmul.f32 %v1427, %v1884
    %v1974 = vmul.f32 %v1429, %v1885
    %v1975 = vmul.f32 %v1431, %v1885
    %v1976 = vmul.f32 %v1433, %v1886
    %v1977 = vmul.f32 %v1435, %v1886
    %v1978 = vmul.f32 %v1437, %v1887
    %v1979 = vmul.f32 %v1439, %v1887
    %v1980 = vmul.f32 %v1441, %v1888
    %v1981 = vmul.f32 %v1443, %v1888
    %v1982 = vmul.f32 %v1445, %v1889
    %v1983 = vmul.f32 %v1447, %v1889
    %v1984 = vmul.f32 %v1449, %v1890
    %v1985 = vmul.f32 %v1451, %v1890
    %v1986 = vmul.f32 %v1453, %v1891
    %v1987 = vmul.f32 %v1455, %v1891
    %2020 = vset.pattern.permute.xlu0 0
    %2021 = vperm.xlu0 %2020, %v1924
    %v2022 = vpop.permute.xlu0 %2021
    %2023 = vset.pattern.permute.xlu0 0
    %2024 = vperm.xlu0 %2023, %v1925
    %v2025 = vpop.permute.xlu0 %2024
    %2026 = vset.pattern.permute.xlu0 0
    %2027 = vperm.xlu0 %2026, %v1926
    %v2028 = vpop.permute.xlu0 %2027
    %2029 = vset.pattern.permute.xlu0 0
    %2030 = vperm.xlu0 %2029, %v1927
    %v2031 = vpop.permute.xlu0 %2030
    %2032 = vset.pattern.permute.xlu0 0
    %2033 = vperm.xlu0 %2032, %v1928
    %v2034 = vpop.permute.xlu0 %2033
    %2035 = vset.pattern.permute.xlu0 0
    %2036 = vperm.xlu0 %2035, %v1929
    %v2037 = vpop.permute.xlu0 %2036
    %2038 = vset.pattern.permute.xlu0 0
    %2039 = vperm.xlu0 %2038, %v1930
    %v2040 = vpop.permute.xlu0 %2039
    %2041 = vset.pattern.permute.xlu0 0
    %2042 = vperm.xlu0 %2041, %v1931
    %v2043 = vpop.permute.xlu0 %2042
    %2044 = vset.pattern.permute.xlu0 0
    %2045 = vperm.xlu0 %2044, %v1932
    %v2046 = vpop.permute.xlu0 %2045
    %2047 = vset.pattern.permute.xlu0 0
    %2048 = vperm.xlu0 %2047, %v1933
    %v2049 = vpop.permute.xlu0 %2048
    %2050 = vset.pattern.permute.xlu0 0
    %2051 = vperm.xlu0 %2050, %v1934
    %v2052 = vpop.permute.xlu0 %2051
    %2053 = vset.pattern.permute.xlu0 0
    %2054 = vperm.xlu0 %2053, %v1935
    %v2055 = vpop.permute.xlu0 %2054
    %2056 = vset.pattern.permute.xlu0 0
    %2057 = vperm.xlu0 %2056, %v1936
    %v2058 = vpop.permute.xlu0 %2057
    %2059 = vset.pattern.permute.xlu0 0
    %2060 = vperm.xlu0 %2059, %v1937
    %v2061 = vpop.permute.xlu0 %2060
    %2062 = vset.pattern.permute.xlu0 0
    %2063 = vperm.xlu0 %2062, %v1938
    %v2064 = vpop.permute.xlu0 %2063
    %2065 = vset.pattern.permute.xlu0 0
    %2066 = vperm.xlu0 %2065, %v1939
    %v2067 = vpop.permute.xlu0 %2066
    %2068 = vset.pattern.permute.xlu0 0
    %2069 = vperm.xlu0 %2068, %v1940
    %v2070 = vpop.permute.xlu0 %2069
    %2071 = vset.pattern.permute.xlu0 0
    %2072 = vperm.xlu0 %2071, %v1941
    %v2073 = vpop.permute.xlu0 %2072
    %2074 = vset.pattern.permute.xlu0 0
    %2075 = vperm.xlu0 %2074, %v1942
    %v2076 = vpop.permute.xlu0 %2075
    %2077 = vset.pattern.permute.xlu0 0
    %2078 = vperm.xlu0 %2077, %v1943
    %v2079 = vpop.permute.xlu0 %2078
    %2080 = vset.pattern.permute.xlu0 0
    %2081 = vperm.xlu0 %2080, %v1944
    %v2082 = vpop.permute.xlu0 %2081
    %2083 = vset.pattern.permute.xlu0 0
    %2084 = vperm.xlu0 %2083, %v1945
    %v2085 = vpop.permute.xlu0 %2084
    %2086 = vset.pattern.permute.xlu0 0
    %2087 = vperm.xlu0 %2086, %v1946
    %v2088 = vpop.permute.xlu0 %2087
    %2089 = vset.pattern.permute.xlu0 0
    %2090 = vperm.xlu0 %2089, %v1947
    %v2091 = vpop.permute.xlu0 %2090
    %2092 = vset.pattern.permute.xlu0 0
    %2093 = vperm.xlu0 %2092, %v1948
    %v2094 = vpop.permute.xlu0 %2093
    %2095 = vset.pattern.permute.xlu0 0
    %2096 = vperm.xlu0 %2095, %v1949
    %v2097 = vpop.permute.xlu0 %2096
    %2098 = vset.pattern.permute.xlu0 0
    %2099 = vperm.xlu0 %2098, %v1950
    %v2100 = vpop.permute.xlu0 %2099
    %2101 = vset.pattern.permute.xlu0 0
    %2102 = vperm.xlu0 %2101, %v1951
    %v2103 = vpop.permute.xlu0 %2102
    %2104 = vset.pattern.permute.xlu0 0
    %2105 = vperm.xlu0 %2104, %v1952
    %v2106 = vpop.permute.xlu0 %2105
    %2107 = vset.pattern.permute.xlu0 0
    %2108 = vperm.xlu0 %2107, %v1953
    %v2109 = vpop.permute.xlu0 %2108
    %2110 = vset.pattern.permute.xlu0 0
    %2111 = vperm.xlu0 %2110, %v1954
    %v2112 = vpop.permute.xlu0 %2111
    %2113 = vset.pattern.permute.xlu0 0
    %2114 = vperm.xlu0 %2113, %v1955
    %v2115 = vpop.permute.xlu0 %2114
    %v2116 = vperm.slane %v2022, %v1045
    %v2117 = vperm.slane %v2025, %v1047
    %v2118 = vsel %vm1049, %v2117, %v2116
    %v2119 = vperm.slane %v2028, %v1045
    %v2120 = vperm.slane %v2031, %v1047
    %v2121 = vsel %vm1049, %v2120, %v2119
    %v2122 = vperm.slane %v2034, %v1045
    %v2123 = vperm.slane %v2037, %v1047
    %v2124 = vsel %vm1049, %v2123, %v2122
    %v2125 = vperm.slane %v2040, %v1045
    %v2126 = vperm.slane %v2043, %v1047
    %v2127 = vsel %vm1049, %v2126, %v2125
    %v2128 = vperm.slane %v2046, %v1045
    %v2129 = vperm.slane %v2049, %v1047
    %v2130 = vsel %vm1049, %v2129, %v2128
    %v2131 = vperm.slane %v2052, %v1045
    %v2132 = vperm.slane %v2055, %v1047
    %v2133 = vsel %vm1049, %v2132, %v2131
    %v2134 = vperm.slane %v2058, %v1045
    %v2135 = vperm.slane %v2061, %v1047
    %v2136 = vsel %vm1049, %v2135, %v2134
    %v2137 = vperm.slane %v2064, %v1045
    %v2138 = vperm.slane %v2067, %v1047
    %v2139 = vsel %vm1049, %v2138, %v2137
    %v2140 = vperm.slane %v2070, %v1045
    %v2141 = vperm.slane %v2073, %v1047
    %v2142 = vsel %vm1049, %v2141, %v2140
    %v2143 = vperm.slane %v2076, %v1045
    %v2144 = vperm.slane %v2079, %v1047
    %v2145 = vsel %vm1049, %v2144, %v2143
    %v2146 = vperm.slane %v2082, %v1045
    %v2147 = vperm.slane %v2085, %v1047
    %v2148 = vsel %vm1049, %v2147, %v2146
    %v2149 = vperm.slane %v2088, %v1045
    %v2150 = vperm.slane %v2091, %v1047
    %v2151 = vsel %vm1049, %v2150, %v2149
    %v2152 = vperm.slane %v2094, %v1045
    %v2153 = vperm.slane %v2097, %v1047
    %v2154 = vsel %vm1049, %v2153, %v2152
    %v2155 = vperm.slane %v2100, %v1045
    %v2156 = vperm.slane %v2103, %v1047
    %v2157 = vsel %vm1049, %v2156, %v2155
    %v2158 = vperm.slane %v2106, %v1045
    %v2159 = vperm.slane %v2109, %v1047
    %v2160 = vsel %vm1049, %v2159, %v2158
    %v2161 = vperm.slane %v2112, %v1045
    %v2162 = vperm.slane %v2115, %v1047
    %v2163 = vsel %vm1049, %v2162, %v2161
    %v2164 = vsel %vm1144, %v2121, %v2118
    %v2165 = vsel %vm1146, %v2124, %v2164
    %v2166 = vsel %vm1148, %v2127, %v2165
    %v2167 = vsel %vm1150, %v2130, %v2166
    %v2168 = vsel %vm1152, %v2133, %v2167
    %v2169 = vsel %vm1154, %v2136, %v2168
    %v2170 = vsel %vm1156, %v2139, %v2169
    %v2171 = vsel %vm1144, %v2145, %v2142
    %v2172 = vsel %vm1146, %v2148, %v2171
    %v2173 = vsel %vm1148, %v2151, %v2172
    %v2174 = vsel %vm1150, %v2154, %v2173
    %v2175 = vsel %vm1152, %v2157, %v2174
    %v2176 = vsel %vm1154, %v2160, %v2175
    %v2177 = vsel %vm1156, %v2163, %v2176
    %v2178 = vsel %vm1183, %v2170, 0
    %v2180 = vsel %vm1183, %v2177, 0
    %2182 = vmatpush.msra.mxu0 0.0
    %2183 = vmatpush.msra.mxu0 0.0
    %2184 = vmatpush.msra.mxu0 0.0
    %2185 = vmatpush.msra.mxu0 0.0
    %2186 = vmatpush.msra.mxu0 0.0
    %2187 = vmatpush.msra.mxu0 0.0
    %2188 = vmatpush.msra.mxu0 0.0
    %2189 = vmatpush.msra.mxu0 0.0
    %2190 = vmatpush.msra.mxu0 0.0
    %2191 = vmatpush.msra.mxu0 0.0
    %2192 = vmatpush.msra.mxu0 0.0
    %2193 = vmatpush.msra.mxu0 0.0
    %2194 = vmatpush.msra.mxu0 0.0
    %2195 = vmatpush.msra.mxu0 0.0
    %2196 = vmatpush.msra.mxu0 %v488
    %2197 = vmatpush.msra.mxu0 %v485
    %2198 = vmatmul.f32.gmra.mxu0 %v2178
    %v2199 = vpop.f32.mrf.mxu0
    %v2200 = vadd.f32 %v160, %v2199
    %2201 = vmatmul.f32.gmra.mxu0 %v2180
    %v2202 = vpop.f32.mrf.mxu0
    %v2203 = vadd.f32 %v161, %v2202
    %2204 = vdwg.mxu0
    %2237 = vset.pattern.permute.xlu0 0
    %2238 = vperm.xlu0 %2237, %v1956
    %v2239 = vpop.permute.xlu0 %2238
    %2240 = vset.pattern.permute.xlu0 0
    %2241 = vperm.xlu0 %2240, %v1957
    %v2242 = vpop.permute.xlu0 %2241
    %2243 = vset.pattern.permute.xlu0 0
    %2244 = vperm.xlu0 %2243, %v1958
    %v2245 = vpop.permute.xlu0 %2244
    %2246 = vset.pattern.permute.xlu0 0
    %2247 = vperm.xlu0 %2246, %v1959
    %v2248 = vpop.permute.xlu0 %2247
    %2249 = vset.pattern.permute.xlu0 0
    %2250 = vperm.xlu0 %2249, %v1960
    %v2251 = vpop.permute.xlu0 %2250
    %2252 = vset.pattern.permute.xlu0 0
    %2253 = vperm.xlu0 %2252, %v1961
    %v2254 = vpop.permute.xlu0 %2253
    %2255 = vset.pattern.permute.xlu0 0
    %2256 = vperm.xlu0 %2255, %v1962
    %v2257 = vpop.permute.xlu0 %2256
    %2258 = vset.pattern.permute.xlu0 0
    %2259 = vperm.xlu0 %2258, %v1963
    %v2260 = vpop.permute.xlu0 %2259
    %2261 = vset.pattern.permute.xlu0 0
    %2262 = vperm.xlu0 %2261, %v1964
    %v2263 = vpop.permute.xlu0 %2262
    %2264 = vset.pattern.permute.xlu0 0
    %2265 = vperm.xlu0 %2264, %v1965
    %v2266 = vpop.permute.xlu0 %2265
    %2267 = vset.pattern.permute.xlu0 0
    %2268 = vperm.xlu0 %2267, %v1966
    %v2269 = vpop.permute.xlu0 %2268
    %2270 = vset.pattern.permute.xlu0 0
    %2271 = vperm.xlu0 %2270, %v1967
    %v2272 = vpop.permute.xlu0 %2271
    %2273 = vset.pattern.permute.xlu0 0
    %2274 = vperm.xlu0 %2273, %v1968
    %v2275 = vpop.permute.xlu0 %2274
    %2276 = vset.pattern.permute.xlu0 0
    %2277 = vperm.xlu0 %2276, %v1969
    %v2278 = vpop.permute.xlu0 %2277
    %2279 = vset.pattern.permute.xlu0 0
    %2280 = vperm.xlu0 %2279, %v1970
    %v2281 = vpop.permute.xlu0 %2280
    %2282 = vset.pattern.permute.xlu0 0
    %2283 = vperm.xlu0 %2282, %v1971
    %v2284 = vpop.permute.xlu0 %2283
    %2285 = vset.pattern.permute.xlu0 0
    %2286 = vperm.xlu0 %2285, %v1972
    %v2287 = vpop.permute.xlu0 %2286
    %2288 = vset.pattern.permute.xlu0 0
    %2289 = vperm.xlu0 %2288, %v1973
    %v2290 = vpop.permute.xlu0 %2289
    %2291 = vset.pattern.permute.xlu0 0
    %2292 = vperm.xlu0 %2291, %v1974
    %v2293 = vpop.permute.xlu0 %2292
    %2294 = vset.pattern.permute.xlu0 0
    %2295 = vperm.xlu0 %2294, %v1975
    %v2296 = vpop.permute.xlu0 %2295
    %2297 = vset.pattern.permute.xlu0 0
    %2298 = vperm.xlu0 %2297, %v1976
    %v2299 = vpop.permute.xlu0 %2298
    %2300 = vset.pattern.permute.xlu0 0
    %2301 = vperm.xlu0 %2300, %v1977
    %v2302 = vpop.permute.xlu0 %2301
    %2303 = vset.pattern.permute.xlu0 0
    %2304 = vperm.xlu0 %2303, %v1978
    %v2305 = vpop.permute.xlu0 %2304
    %2306 = vset.pattern.permute.xlu0 0
    %2307 = vperm.xlu0 %2306, %v1979
    %v2308 = vpop.permute.xlu0 %2307
    %2309 = vset.pattern.permute.xlu0 0
    %2310 = vperm.xlu0 %2309, %v1980
    %v2311 = vpop.permute.xlu0 %2310
    %2312 = vset.pattern.permute.xlu0 0
    %2313 = vperm.xlu0 %2312, %v1981
    %v2314 = vpop.permute.xlu0 %2313
    %2315 = vset.pattern.permute.xlu0 0
    %2316 = vperm.xlu0 %2315, %v1982
    %v2317 = vpop.permute.xlu0 %2316
    %2318 = vset.pattern.permute.xlu0 0
    %2319 = vperm.xlu0 %2318, %v1983
    %v2320 = vpop.permute.xlu0 %2319
    %2321 = vset.pattern.permute.xlu0 0
    %2322 = vperm.xlu0 %2321, %v1984
    %v2323 = vpop.permute.xlu0 %2322
    %2324 = vset.pattern.permute.xlu0 0
    %2325 = vperm.xlu0 %2324, %v1985
    %v2326 = vpop.permute.xlu0 %2325
    %2327 = vset.pattern.permute.xlu0 0
    %2328 = vperm.xlu0 %2327, %v1986
    %v2329 = vpop.permute.xlu0 %2328
    %2330 = vset.pattern.permute.xlu0 0
    %2331 = vperm.xlu0 %2330, %v1987
    %v2332 = vpop.permute.xlu0 %2331
    %v2333 = vperm.slane %v2239, %v1045
    %v2334 = vperm.slane %v2242, %v1047
    %v2335 = vsel %vm1049, %v2334, %v2333
    %v2336 = vperm.slane %v2245, %v1045
    %v2337 = vperm.slane %v2248, %v1047
    %v2338 = vsel %vm1049, %v2337, %v2336
    %v2339 = vperm.slane %v2251, %v1045
    %v2340 = vperm.slane %v2254, %v1047
    %v2341 = vsel %vm1049, %v2340, %v2339
    %v2342 = vperm.slane %v2257, %v1045
    %v2343 = vperm.slane %v2260, %v1047
    %v2344 = vsel %vm1049, %v2343, %v2342
    %v2345 = vperm.slane %v2263, %v1045
    %v2346 = vperm.slane %v2266, %v1047
    %v2347 = vsel %vm1049, %v2346, %v2345
    %v2348 = vperm.slane %v2269, %v1045
    %v2349 = vperm.slane %v2272, %v1047
    %v2350 = vsel %vm1049, %v2349, %v2348
    %v2351 = vperm.slane %v2275, %v1045
    %v2352 = vperm.slane %v2278, %v1047
    %v2353 = vsel %vm1049, %v2352, %v2351
    %v2354 = vperm.slane %v2281, %v1045
    %v2355 = vperm.slane %v2284, %v1047
    %v2356 = vsel %vm1049, %v2355, %v2354
    %v2357 = vperm.slane %v2287, %v1045
    %v2358 = vperm.slane %v2290, %v1047
    %v2359 = vsel %vm1049, %v2358, %v2357
    %v2360 = vperm.slane %v2293, %v1045
    %v2361 = vperm.slane %v2296, %v1047
    %v2362 = vsel %vm1049, %v2361, %v2360
    %v2363 = vperm.slane %v2299, %v1045
    %v2364 = vperm.slane %v2302, %v1047
    %v2365 = vsel %vm1049, %v2364, %v2363
    %v2366 = vperm.slane %v2305, %v1045
    %v2367 = vperm.slane %v2308, %v1047
    %v2368 = vsel %vm1049, %v2367, %v2366
    %v2369 = vperm.slane %v2311, %v1045
    %v2370 = vperm.slane %v2314, %v1047
    %v2371 = vsel %vm1049, %v2370, %v2369
    %v2372 = vperm.slane %v2317, %v1045
    %v2373 = vperm.slane %v2320, %v1047
    %v2374 = vsel %vm1049, %v2373, %v2372
    %v2375 = vperm.slane %v2323, %v1045
    %v2376 = vperm.slane %v2326, %v1047
    %v2377 = vsel %vm1049, %v2376, %v2375
    %v2378 = vperm.slane %v2329, %v1045
    %v2379 = vperm.slane %v2332, %v1047
    %v2380 = vsel %vm1049, %v2379, %v2378
    %v2381 = vsel %vm1144, %v2338, %v2335
    %v2382 = vsel %vm1146, %v2341, %v2381
    %v2383 = vsel %vm1148, %v2344, %v2382
    %v2384 = vsel %vm1150, %v2347, %v2383
    %v2385 = vsel %vm1152, %v2350, %v2384
    %v2386 = vsel %vm1154, %v2353, %v2385
    %v2387 = vsel %vm1156, %v2356, %v2386
    %v2388 = vsel %vm1144, %v2362, %v2359
    %v2389 = vsel %vm1146, %v2365, %v2388
    %v2390 = vsel %vm1148, %v2368, %v2389
    %v2391 = vsel %vm1150, %v2371, %v2390
    %v2392 = vsel %vm1152, %v2374, %v2391
    %v2393 = vsel %vm1154, %v2377, %v2392
    %v2394 = vsel %vm1156, %v2380, %v2393
    %v2395 = vsel %vm1183, %v2387, 0
    %v2397 = vsel %vm1183, %v2394, 0
    %2399 = vmatpush.msra.mxu0 0.0
    %2400 = vmatpush.msra.mxu0 0.0
    %2401 = vmatpush.msra.mxu0 0.0
    %2402 = vmatpush.msra.mxu0 0.0
    %2403 = vmatpush.msra.mxu0 0.0
    %2404 = vmatpush.msra.mxu0 0.0
    %2405 = vmatpush.msra.mxu0 0.0
    %2406 = vmatpush.msra.mxu0 0.0
    %2407 = vmatpush.msra.mxu0 0.0
    %2408 = vmatpush.msra.mxu0 0.0
    %2409 = vmatpush.msra.mxu0 0.0
    %2410 = vmatpush.msra.mxu0 0.0
    %2411 = vmatpush.msra.mxu0 0.0
    %2412 = vmatpush.msra.mxu0 0.0
    %2413 = vmatpush.msra.mxu0 %v494
    %2414 = vmatpush.msra.mxu0 %v491
    %2415 = vmatmul.f32.gmra.mxu0 %v2395
    %v2416 = vpop.f32.mrf.mxu0
    %v2417 = vadd.f32 %v162, %v2416
    %2418 = vmatmul.f32.gmra.mxu0 %v2397
    %v2419 = vpop.f32.mrf.mxu0
    %v2420 = vadd.f32 %v163, %v2419
    %2421 = vdwg.mxu0
    %2422 = vst.msk [vmem:[#allocation14] sm:$0xff] %vm176, %v2200
    %2423 = vst.msk [vmem:[#allocation14 + $0x8] sm:$0xff] %vm176, %v2203
    %2424 = vst.msk [vmem:[#allocation14 + $0x10] sm:$0xff] %vm176, %v2417
    %2425 = vst.msk [vmem:[#allocation14 + $0x18] sm:$0xff] %vm176, %v2420
    // Predicated region
    $region90: #{tpu_custom_call.1} parent=1 // pred_check
      _
    $region91: #{tpu_custom_call.1} parent=1 // pred_check_branch
      %2427 = sbr.rel (0) target = $region93
    $region92: #{tpu_custom_call.1} parent=1 // pred_region
      %2429 = vsyncadd [#allocation4], 0
      %s2430 = sshll.u32 [#allocation14], 4
      %s2431 = int_to_ptr.vmem [resolvable:$true] %s2430
      %s2432 = sshll.u32 %s15, 4
      %s2433 = int_to_ptr.hbm [resolvable:$true] %s2432
      %2438 = dma.vmem_to_hbm [thread:$0]  %s2431, 512, %s2433, [#allocation4], 128, 128, 8
    $region93: #{tpu_custom_call.1} parent=1 // pred_fallthru
      _
    // Predicated region
    $region94: #{tpu_custom_call.1} parent=1 // pred_check
      _
    $region95: #{tpu_custom_call.1} parent=1 // pred_check_branch
      %2440 = sbr.rel (0) target = $region97
    $region96: #{tpu_custom_call.1} parent=1 // pred_region
      %2442 = dma.done [#allocation4], 512
    $region97: #{tpu_custom_call.1} parent=1 // pred_fallthru
      _
    %2443 = vsyncpa [#allocation3], 1
    %2444 = vsyncpa [#allocation6], 1
    %2445 = vsyncpa [#allocation9], 1
    %2446 = vsyncpa [#allocation12], 1
    %2447 = vsyncpa [#allocation4], 1

</llo_original>
